<compile_context>
chip_gen: v5e
topology: v5e:2x2
jax: 0.10.0
libtpu: 0.0.40
codegen_flags: <defaults>
</compile_context>

<pallas_src>
import functools

import jax
import jax.numpy as jnp
from jax.experimental import pallas as pl
from jax.experimental.pallas import tpu as pltpu


def _round_up(x, m):
    return ((x + m - 1) // m) * m


# ----------------------------- Pallas kernel -----------------------------
def dueling_dqn_kernel(
    x_ref,                 # (TB, F)        bf16
    w1_ref, b1_ref,        # (F, 512) bf16, (1, 512) f32
    w2_ref, b2_ref,        # (512, 128) bf16, (1, 128) f32
    wh_ref, bh_ref,        # (128, 128) bf16 fused [wv1 | wa1 | 0], (1, 128) f32
    wv2_ref, bv2_ref,      # (1, 128) f32 (wv2 row, zero-padded), (1, 1) f32
    wa2_ref, ba2_ref,      # (128, OUT_PAD) bf16 (rows 32:64 = wa2), (1, OUT_PAD) f32
    out_ref,               # (TB, OUT_PAD)  f32
    *, out_dim: int,
):
    # common trunk: Linear(F,512)+ReLU, Linear(512,128)+ReLU  (bf16 MXU, f32 acc)
    h = jnp.dot(x_ref[...], w1_ref[...],
                preferred_element_type=jnp.float32) + b1_ref[...]
    h = jnp.maximum(h, 0.0)
    h = jnp.dot(h.astype(jnp.bfloat16), w2_ref[...],
                preferred_element_type=jnp.float32) + b2_ref[...]
    h = jnp.maximum(h, 0.0)

    # fused head hidden layer: value hidden in cols 0:32, advantage hidden in
    # cols 32:64, remaining columns are exact zeros (zero weights + zero bias).
    hh = jnp.dot(h.astype(jnp.bfloat16), wh_ref[...],
                 preferred_element_type=jnp.float32) + bh_ref[...]
    hh = jnp.maximum(hh, 0.0)

    # value stream: N=1 matmul replaced by VPU multiply + lane reduce.
    # wv2_ref is zero outside columns 0:32, so the padded lanes contribute 0.
    v = jnp.sum(hh * wv2_ref[...], axis=-1, keepdims=True) + bv2_ref[...]

    # advantage stream: (TB,128)@(128,OUT_PAD); only rows 32:64 of wa2_ref are
    # non-zero, so value-hidden / padding columns of hh contribute exactly 0.
    # (v5e-only note: could slice hh[:, 32:64] into a K=32 dot to shave MXU
    #  cycles; hidden under DMA on v6e/v7x, so keep the simple K=128 form.)
    a = jnp.dot(hh.astype(jnp.bfloat16), wa2_ref[...],
                preferred_element_type=jnp.float32) + ba2_ref[...]

    # dueling combination; padded output lanes of `a` are exact zeros, so the
    # sum over OUT_PAD columns divided by the real out_dim is the true mean.
    a_mean = jnp.sum(a, axis=-1, keepdims=True) * (1.0 / out_dim)
    out_ref[...] = (v + a - a_mean).astype(out_ref.dtype)


# ------------------------ parameter repacking ------------------------------
def prepare_params(p, n_actions, num_bins=51):
    """Repack PyTorch-layout params into the fused / padded / bf16 layout."""
    out_dim = n_actions * num_bins
    out_pad = _round_up(out_dim, 128)
    f32 = jnp.float32

    w_head = jnp.zeros((128, 128), f32)
    w_head = w_head.at[:, 0:32].set(p["wv1"]).at[:, 32:64].set(p["wa1"])
    b_head = jnp.zeros((1, 128), f32)
    b_head = b_head.at[:, 0:32].set(p["bv1"]).at[:, 32:64].set(p["ba1"])

    wv2_row = jnp.zeros((1, 128), f32).at[:, 0:32].set(p["wv2"].T)

    # NOTE: padding of wa2/ba2 columns [out_dim:out_pad] (and rows outside
    # 32:64 of wa2) MUST stay exactly zero — the in-kernel mean relies on it.
    wa2_pad = jnp.zeros((128, out_pad), f32).at[32:64, 0:out_dim].set(p["wa2"])
    ba2_pad = jnp.zeros((1, out_pad), f32).at[:, 0:out_dim].set(p["ba2"])

    return {
        "w1": p["w1"].astype(jnp.bfloat16), "b1": p["b1"],
        "w2": p["w2"].astype(jnp.bfloat16), "b2": p["b2"],
        "w_head": w_head.astype(jnp.bfloat16), "b_head": b_head,
        "wv2_row": wv2_row, "bv2": p["bv2"],
        "wa2": wa2_pad.astype(jnp.bfloat16), "ba2": ba2_pad,
        "out_dim": out_dim, "out_pad": out_pad,
    }


# ----------------------------- wrapper ------------------------------------
def _pick_batch_tile(B):
    """Largest tile in {1024, 512, 256} with <=25% pad waste; else one small
    sublane-aligned tile.  Per-grid-step overhead (~0.35 us) is amortized much
    better at 512/1024-row tiles (~85% of HBM roofline vs ~63% at 256)."""
    if B < 256:
        return _round_up(max(B, 1), 8)
    for tb in (1024, 512, 256):
        if B >= tb and (_round_up(B, tb) - B) * 4 <= B:
            return tb
    return 256


def dueling_dqn_forward(x, kp, *, return_padded=False):
    """x: (B, C, H, W). kp: dict from prepare_params().

    return_padded=True returns the lane-dense (B, out_pad) buffer (row slice
    only); columns [out_dim:] are filler.  Default slices to (B, out_dim) to
    match the PyTorch module exactly (costs one extra lane-masked copy)."""
    B = x.shape[0]
    F = 1
    for d in x.shape[1:]:
        F *= d
    # nn.Flatten + bf16 cast; the cast fuses with the pad below (and is flagged
    # via allow_input_fusion so XLA may fuse it into the pallas operand).
    x_flat = x.reshape(B, F).astype(jnp.bfloat16)

    TB = _pick_batch_tile(B)
    B_pad = _round_up(B, TB)
    if B_pad != B:
        x_flat = jnp.pad(x_flat, ((0, B_pad - B), (0, 0)))

    out_dim, out_pad = kp["out_dim"], kp["out_pad"]

    weights = (
        kp["w1"], kp["b1"], kp["w2"], kp["b2"],
        kp["w_head"], kp["b_head"], kp["wv2_row"], kp["bv2"],
        kp["wa2"], kp["ba2"],
    )
    # Weights/biases: full-array blocks with a constant index_map -> DMA'd
    # once, VMEM-resident across all batch tiles.
    # TODO(synk): for tiny-batch serving, keep weights resident across calls
    # (cross-pallas_call prefetch) instead of re-DMA'ing ~1.25 MiB per call.
    w_specs = [pl.BlockSpec(w.shape, lambda i: (0, 0)) for w in weights]

    weight_bytes = sum(int(w.size) * w.dtype.itemsize for w in weights)
    x_bytes = int(B_pad) * F * 2
    out_bytes = int(B_pad) * out_pad * 4
    flops = 2 * int(B_pad) * (F * 512 + 512 * 128 + 128 * 128 + 128 * out_pad)

    # VMEM budget: 2x double-buffered x/out tiles + (conservatively 2x) resident
    # weights + f32 intermediates, with ~2x headroom.  Explicit so large TB
    # doesn't trip v5e's 16 MiB scoped default; well inside v7x's 64 MiB.
    vmem_need = (2 * TB * F * 2 + 2 * TB * out_pad * 4 + 2 * weight_bytes
                 + TB * (512 + 128 + 128 + out_pad) * 4)
    vmem_limit = int(min(max(2 * vmem_need, 32 * 1024 * 1024), 64 * 1024 * 1024))

    out = pl.pallas_call(
        functools.partial(dueling_dqn_kernel, out_dim=out_dim),
        out_shape=jax.ShapeDtypeStruct((B_pad, out_pad), jnp.float32),
        grid_spec=pltpu.PrefetchScalarGridSpec(
            num_scalar_prefetch=0,
            grid=(B_pad // TB,),
            in_specs=[pl.BlockSpec((TB, F), lambda i: (i, 0))] + w_specs,
            out_specs=pl.BlockSpec((TB, out_pad), lambda i: (i, 0)),
        ),
        compiler_params=pltpu.CompilerParams(
            # Batch axis is independent -> shard across TCs (megacore / v7x).
            # TODO(synk): on v7x, verify 2-TC sharding; if not, switch to
            # pltpu.CORE_PARALLEL with an even grid-step count.
            dimension_semantics=("parallel",),
            vmem_limit_bytes=vmem_limit,
            allow_input_fusion=[True] + [False] * len(weights),
        ),
        cost_estimate=pl.CostEstimate(
            flops=flops,
            transcendentals=0,
            bytes_accessed=x_bytes + weight_bytes + out_bytes,
        ),
    )(x_flat, *weights)

    if return_padded:
        return out[:B]            # lane-dense; caller indexes cols [:out_dim]
    return out[:B, :out_dim]      # exact PyTorch-module output shape


# --------------------- deterministic parameter init -----------------------
def _linear_params(key, fan_in, fan_out):
    """Mimic torch.nn.Linear default init: U(-1/sqrt(fan_in), 1/sqrt(fan_in))."""
    kw, kb = jax.random.split(key)
    bound = 1.0 / jnp.sqrt(jnp.float32(fan_in))
    w = jax.random.uniform(kw, (fan_in, fan_out), jnp.float32, -bound, bound)
    b = jax.random.uniform(kb, (1, fan_out), jnp.float32, -bound, bound)
    return w, b


def init_dueling_dqn_params(key, num_features, n_actions, num_bins=51):
    keys = jax.random.split(key, 6)
    out_dim = n_actions * num_bins
    p = {}
    p["w1"], p["b1"] = _linear_params(keys[0], num_features, 512)
    p["w2"], p["b2"] = _linear_params(keys[1], 512, 128)
    p["wv1"], p["bv1"] = _linear_params(keys[2], 128, 32)
    p["wv2"], p["bv2"] = _linear_params(keys[3], 32, 1)
    p["wa1"], p["ba1"] = _linear_params(keys[4], 128, 32)
    p["wa2"], p["ba2"] = _linear_params(keys[5], 32, out_dim)
    return p


# --------------------------- pure-JAX reference ----------------------------
def _ref_forward(x, p):
    """Mirror of the original (un-fused, un-padded) module, using the same
    bf16 weight/activation quantization and f32 accumulation as the kernel so
    the comparison isolates structural correctness.  (Divergence from a true
    f32 PyTorch forward is larger than this tolerance for a 1024-deep bf16
    contraction — acceptable for DQN inference.)"""
    B = x.shape[0]
    bf = jnp.bfloat16

    def dot(a, w):
        return jnp.dot(a.astype(bf), w.astype(bf),
                       preferred_element_type=jnp.float32)

    h = x.reshape(B, -1)
    h = jnp.maximum(dot(h, p["w1"]) + p["b1"], 0.0)
    h = jnp.maximum(dot(h, p["w2"]) + p["b2"], 0.0)
    vh = jnp.maximum(dot(h, p["wv1"]) + p["bv1"], 0.0)
    v = jnp.dot(vh, p["wv2"]) + p["bv2"]          # kernel does this in f32 on the VPU
    ah = jnp.maximum(dot(h, p["wa1"]) + p["ba1"], 0.0)
    a = dot(ah, p["wa2"]) + p["ba2"]
    return v + a - a.mean(axis=1, keepdims=True)


if __name__ == "__main__":
    # input_shape = (4, 16, 16)  ->  num_features = 1024
    B, C, H, W = 2, 4, 16, 16
    n_actions, num_bins = 4, 51

    key = jax.random.PRNGKey(0)
    kx, kp_key = jax.random.split(key)
    x = jax.random.normal(kx, (B, C, H, W), jnp.float32)
    params = init_dueling_dqn_params(kp_key, C * H * W, n_actions, num_bins)
    kernel_params = prepare_params(params, n_actions, num_bins)

    q = dueling_dqn_forward(x, kernel_params)
    q = jax.block_until_ready(q)

    q_ref = _ref_forward(x, params)
    assert q.shape == (B, n_actions * num_bins), q.shape
    assert jnp.allclose(q, q_ref, atol=2e-3, rtol=2e-3), "mismatch vs JAX reference"

    print("KERNEL_OK")
</pallas_src>

<mosaic_0001>
module attributes {stable_mosaic.version = 11 : i64} {
  func.func @dueling_dqn_kernel(%arg0: i32, %arg1: memref<8x1024xbf16, #tpu.memory_space<vmem>>, %arg2: memref<1024x512xbf16, #tpu.memory_space<vmem>>, %arg3: memref<1x512xf32, #tpu.memory_space<vmem>>, %arg4: memref<512x128xbf16, #tpu.memory_space<vmem>>, %arg5: memref<1x128xf32, #tpu.memory_space<vmem>>, %arg6: memref<128x128xbf16, #tpu.memory_space<vmem>>, %arg7: memref<1x128xf32, #tpu.memory_space<vmem>>, %arg8: memref<1x128xf32, #tpu.memory_space<vmem>>, %arg9: memref<1x1xf32, #tpu.memory_space<vmem>>, %arg10: memref<128x256xbf16, #tpu.memory_space<vmem>>, %arg11: memref<1x256xf32, #tpu.memory_space<vmem>>, %arg12: memref<8x256xf32, #tpu.memory_space<vmem>>) attributes {dimension_semantics = [#tpu.dimension_semantics<parallel>], iteration_bounds = array<i64: 1>, scalar_prefetch = 0 : i64, scratch_operands = 0 : i64, tpu.core_type = #tpu.core_type<tc>, window_params = [{transform_indices = @transform_0, window_bounds = array<i64: 8, 1024>}, {pipeline_mode = #tpu.pipeline_mode<synchronous>, transform_indices = @transform_1, window_bounds = array<i64: 1024, 512>}, {pipeline_mode = #tpu.pipeline_mode<synchronous>, transform_indices = @transform_2, window_bounds = array<i64: 1, 512>}, {pipeline_mode = #tpu.pipeline_mode<synchronous>, transform_indices = @transform_3, window_bounds = array<i64: 512, 128>}, {pipeline_mode = #tpu.pipeline_mode<synchronous>, transform_indices = @transform_4, window_bounds = array<i64: 1, 128>}, {pipeline_mode = #tpu.pipeline_mode<synchronous>, transform_indices = @transform_5, window_bounds = array<i64: 128, 128>}, {pipeline_mode = #tpu.pipeline_mode<synchronous>, transform_indices = @transform_6, window_bounds = array<i64: 1, 128>}, {pipeline_mode = #tpu.pipeline_mode<synchronous>, transform_indices = @transform_7, window_bounds = array<i64: 1, 128>}, {pipeline_mode = #tpu.pipeline_mode<synchronous>, transform_indices = @transform_8, window_bounds = array<i64: 1, 1>}, {pipeline_mode = #tpu.pipeline_mode<synchronous>, transform_indices = @transform_9, window_bounds = array<i64: 128, 256>}, {pipeline_mode = #tpu.pipeline_mode<synchronous>, transform_indices = @transform_10, window_bounds = array<i64: 1, 256>}, {transform_indices = @transform_11, window_bounds = array<i64: 8, 256>}]} {
    %c0 = arith.constant 0 : index
    %c0_0 = arith.constant 0 : index
    %0 = vector.load %arg1[%c0, %c0_0] : memref<8x1024xbf16, #tpu.memory_space<vmem>>, vector<8x1024xbf16>
    %c0_1 = arith.constant 0 : index
    %c0_2 = arith.constant 0 : index
    %1 = vector.load %arg2[%c0_1, %c0_2] : memref<1024x512xbf16, #tpu.memory_space<vmem>>, vector<1024x512xbf16>
    %cst = arith.constant dense<0.000000e+00> : vector<8x512xf32>
    %2 = tpu.matmul %0, %1, %cst {dimension_numbers = #tpu.dot_dimension_numbers<[1], [0], [0], [1], [0, 0, 1, 1], [], []>} : vector<8x1024xbf16>, vector<1024x512xbf16>, vector<8x512xf32> -> vector<8x512xf32>
    %c0_3 = arith.constant 0 : index
    %c0_4 = arith.constant 0 : index
    %3 = vector.load %arg3[%c0_3, %c0_4] : memref<1x512xf32, #tpu.memory_space<vmem>>, vector<1x512xf32>
    %4 = vector.broadcast %3 : vector<1x512xf32> to vector<8x512xf32>
    %5 = arith.addf %2, %4 : vector<8x512xf32>
    %cst_5 = arith.constant 0.000000e+00 : f32
    %6 = vector.broadcast %cst_5 : f32 to vector<8x512xf32>
    %7 = arith.maximumf %5, %6 : vector<8x512xf32>
    %8 = arith.truncf %7 : vector<8x512xf32> to vector<8x512xbf16>
    %c0_6 = arith.constant 0 : index
    %c0_7 = arith.constant 0 : index
    %9 = vector.load %arg4[%c0_6, %c0_7] : memref<512x128xbf16, #tpu.memory_space<vmem>>, vector<512x128xbf16>
    %cst_8 = arith.constant dense<0.000000e+00> : vector<8x128xf32>
    %10 = tpu.matmul %8, %9, %cst_8 {dimension_numbers = #tpu.dot_dimension_numbers<[1], [0], [0], [1], [0, 0, 1, 1], [], []>} : vector<8x512xbf16>, vector<512x128xbf16>, vector<8x128xf32> -> vector<8x128xf32>
    %c0_9 = arith.constant 0 : index
    %c0_10 = arith.constant 0 : index
    %11 = vector.load %arg5[%c0_9, %c0_10] : memref<1x128xf32, #tpu.memory_space<vmem>>, vector<1x128xf32>
    %12 = vector.broadcast %11 : vector<1x128xf32> to vector<8x128xf32>
    %13 = arith.addf %10, %12 : vector<8x128xf32>
    %cst_11 = arith.constant 0.000000e+00 : f32
    %14 = vector.broadcast %cst_11 : f32 to vector<8x128xf32>
    %15 = arith.maximumf %13, %14 : vector<8x128xf32>
    %16 = arith.truncf %15 : vector<8x128xf32> to vector<8x128xbf16>
    %c0_12 = arith.constant 0 : index
    %c0_13 = arith.constant 0 : index
    %17 = vector.load %arg6[%c0_12, %c0_13] : memref<128x128xbf16, #tpu.memory_space<vmem>>, vector<128x128xbf16>
    %cst_14 = arith.constant dense<0.000000e+00> : vector<8x128xf32>
    %18 = tpu.matmul %16, %17, %cst_14 {dimension_numbers = #tpu.dot_dimension_numbers<[1], [0], [0], [1], [0, 0, 1, 1], [], []>} : vector<8x128xbf16>, vector<128x128xbf16>, vector<8x128xf32> -> vector<8x128xf32>
    %c0_15 = arith.constant 0 : index
    %c0_16 = arith.constant 0 : index
    %19 = vector.load %arg7[%c0_15, %c0_16] : memref<1x128xf32, #tpu.memory_space<vmem>>, vector<1x128xf32>
    %20 = vector.broadcast %19 : vector<1x128xf32> to vector<8x128xf32>
    %21 = arith.addf %18, %20 : vector<8x128xf32>
    %cst_17 = arith.constant 0.000000e+00 : f32
    %22 = vector.broadcast %cst_17 : f32 to vector<8x128xf32>
    %23 = arith.maximumf %21, %22 : vector<8x128xf32>
    %c0_18 = arith.constant 0 : index
    %c0_19 = arith.constant 0 : index
    %24 = vector.load %arg8[%c0_18, %c0_19] : memref<1x128xf32, #tpu.memory_space<vmem>>, vector<1x128xf32>
    %25 = vector.broadcast %24 : vector<1x128xf32> to vector<8x128xf32>
    %26 = arith.mulf %23, %25 : vector<8x128xf32>
    %cst_20 = arith.constant dense<0.000000e+00> : vector<8xf32>
    %27 = vector.multi_reduction <add>, %26, %cst_20 [1] : vector<8x128xf32> to vector<8xf32>
    %28 = vector.shape_cast %27 : vector<8xf32> to vector<8x1xf32>
    %c0_21 = arith.constant 0 : index
    %c0_22 = arith.constant 0 : index
    %29 = vector.load %arg9[%c0_21, %c0_22] : memref<1x1xf32, #tpu.memory_space<vmem>>, vector<1x1xf32>
    %30 = vector.broadcast %29 : vector<1x1xf32> to vector<8x1xf32>
    %31 = arith.addf %28, %30 : vector<8x1xf32>
    %32 = arith.truncf %23 : vector<8x128xf32> to vector<8x128xbf16>
    %c0_23 = arith.constant 0 : index
    %c0_24 = arith.constant 0 : index
    %33 = vector.load %arg10[%c0_23, %c0_24] : memref<128x256xbf16, #tpu.memory_space<vmem>>, vector<128x256xbf16>
    %cst_25 = arith.constant dense<0.000000e+00> : vector<8x256xf32>
    %34 = tpu.matmul %32, %33, %cst_25 {dimension_numbers = #tpu.dot_dimension_numbers<[1], [0], [0], [1], [0, 0, 1, 1], [], []>} : vector<8x128xbf16>, vector<128x256xbf16>, vector<8x256xf32> -> vector<8x256xf32>
    %c0_26 = arith.constant 0 : index
    %c0_27 = arith.constant 0 : index
    %35 = vector.load %arg11[%c0_26, %c0_27] : memref<1x256xf32, #tpu.memory_space<vmem>>, vector<1x256xf32>
    %36 = vector.broadcast %35 : vector<1x256xf32> to vector<8x256xf32>
    %37 = arith.addf %34, %36 : vector<8x256xf32>
    %cst_28 = arith.constant dense<0.000000e+00> : vector<8xf32>
    %38 = vector.multi_reduction <add>, %37, %cst_28 [1] : vector<8x256xf32> to vector<8xf32>
    %39 = vector.shape_cast %38 : vector<8xf32> to vector<8x1xf32>
    %cst_29 = arith.constant 0.00490196096 : f32
    %40 = vector.broadcast %cst_29 : f32 to vector<8x1xf32>
    %41 = arith.mulf %39, %40 : vector<8x1xf32>
    %42 = vector.broadcast %31 : vector<8x1xf32> to vector<8x256xf32>
    %43 = arith.addf %42, %37 : vector<8x256xf32>
    %44 = vector.broadcast %41 : vector<8x1xf32> to vector<8x256xf32>
    %45 = arith.subf %43, %44 : vector<8x256xf32>
    %c0_30 = arith.constant 0 : index
    %c0_31 = arith.constant 0 : index
    %46 = vector.load %arg12[%c0_30, %c0_31] : memref<8x256xf32, #tpu.memory_space<vmem>>, vector<8x256xf32>
    tpu.vector_store %arg12[%c0_30, %c0_31], %45 {strides = array<i32>} : memref<8x256xf32, #tpu.memory_space<vmem>>, vector<8x256xf32>,
    return
  }
  func.func @transform_0(%arg0: i32) -> (i32, i32) {
    %c0_i32 = arith.constant 0 : i32
    %c0_i32_0 = arith.constant 0 : i32
    return %arg0, %c0_i32 : i32, i32
  }
  func.func @transform_1(%arg0: i32) -> (i32, i32) {
    %c0_i32 = arith.constant 0 : i32
    %c0_i32_0 = arith.constant 0 : i32
    %c0_i32_1 = arith.constant 0 : i32
    return %c0_i32, %c0_i32_0 : i32, i32
  }
  func.func @transform_2(%arg0: i32) -> (i32, i32) {
    %c0_i32 = arith.constant 0 : i32
    %c0_i32_0 = arith.constant 0 : i32
    %c0_i32_1 = arith.constant 0 : i32
    return %c0_i32, %c0_i32_0 : i32, i32
  }
  func.func @transform_3(%arg0: i32) -> (i32, i32) {
    %c0_i32 = arith.constant 0 : i32
    %c0_i32_0 = arith.constant 0 : i32
    %c0_i32_1 = arith.constant 0 : i32
    return %c0_i32, %c0_i32_0 : i32, i32
  }
  func.func @transform_4(%arg0: i32) -> (i32, i32) {
    %c0_i32 = arith.constant 0 : i32
    %c0_i32_0 = arith.constant 0 : i32
    %c0_i32_1 = arith.constant 0 : i32
    return %c0_i32, %c0_i32_0 : i32, i32
  }
  func.func @transform_5(%arg0: i32) -> (i32, i32) {
    %c0_i32 = arith.constant 0 : i32
    %c0_i32_0 = arith.constant 0 : i32
    %c0_i32_1 = arith.constant 0 : i32
    return %c0_i32, %c0_i32_0 : i32, i32
  }
  func.func @transform_6(%arg0: i32) -> (i32, i32) {
    %c0_i32 = arith.constant 0 : i32
    %c0_i32_0 = arith.constant 0 : i32
    %c0_i32_1 = arith.constant 0 : i32
    return %c0_i32, %c0_i32_0 : i32, i32
  }
  func.func @transform_7(%arg0: i32) -> (i32, i32) {
    %c0_i32 = arith.constant 0 : i32
    %c0_i32_0 = arith.constant 0 : i32
    %c0_i32_1 = arith.constant 0 : i32
    return %c0_i32, %c0_i32_0 : i32, i32
  }
  func.func @transform_8(%arg0: i32) -> (i32, i32) {
    %c0_i32 = arith.constant 0 : i32
    %c0_i32_0 = arith.constant 0 : i32
    %c0_i32_1 = arith.constant 0 : i32
    return %c0_i32, %c0_i32_0 : i32, i32
  }
  func.func @transform_9(%arg0: i32) -> (i32, i32) {
    %c0_i32 = arith.constant 0 : i32
    %c0_i32_0 = arith.constant 0 : i32
    %c0_i32_1 = arith.constant 0 : i32
    return %c0_i32, %c0_i32_0 : i32, i32
  }
  func.func @transform_10(%arg0: i32) -> (i32, i32) {
    %c0_i32 = arith.constant 0 : i32
    %c0_i32_0 = arith.constant 0 : i32
    %c0_i32_1 = arith.constant 0 : i32
    return %c0_i32, %c0_i32_0 : i32, i32
  }
  func.func @transform_11(%arg0: i32) -> (i32, i32) {
    %c0_i32 = arith.constant 0 : i32
    %c0_i32_0 = arith.constant 0 : i32
    return %arg0, %c0_i32 : i32, i32
  }
}

</mosaic_0001>

<llo_original>
// kernel: tpu_custom_call.1
$region0: #{tpu_custom_call.1}
  #allocation0 [shape = 'u32[]', space=smem, size = 0x4, offset = 0x4, fixed_abs, tag = 'smem constant byte address 0x4 - core index']
  #allocation1 [shape = 'u32[72,128]{1,0:T(1,128)}', space=vmem, size = 0x9000, scoped, tag = 'internal scratch']
  #allocation2 [shape = 'f32[1,1]{1,0:T(1,128)S(1)}', space=vmem, size = 0x200, scoped, tag = 'scoped memory for tpu_custom_call.1']
  %s0 = inlined_call_operand.hbm [shape: bf16[8,1024], index: 0, kind: input, shape index: {}]
  %s1 = inlined_call_operand.hbm [shape: bf16[1024,512], index: 1, kind: input, shape index: {}]
  %s2 = inlined_call_operand.hbm [shape: f32[1,512], index: 2, kind: input, shape index: {}]
  %s3 = inlined_call_operand.hbm [shape: bf16[512,128], index: 3, kind: input, shape index: {}]
  %s4 = inlined_call_operand.vmem [shape: f32[1,128], index: 4, kind: input, shape index: {}]
  %s5 = inlined_call_operand.hbm [shape: bf16[128,128], index: 5, kind: input, shape index: {}]
  %s6 = inlined_call_operand.vmem [shape: f32[1,128], index: 6, kind: input, shape index: {}]
  %s7 = inlined_call_operand.vmem [shape: f32[1,128], index: 7, kind: input, shape index: {}]
  %s8 = inlined_call_operand.<no memory space> [shape: f32[1,1], index: 8, kind: input, shape index: {}]
  %s9 = inlined_call_operand.hbm [shape: bf16[128,256], index: 9, kind: input, shape index: {}]
  %s10 = inlined_call_operand.vmem [shape: f32[1,256], index: 10, kind: input, shape index: {}]
  %s11 = inlined_call_operand.hbm [shape: f32[8,256], index: 11, kind: output, shape index: {}]
  %s12 = sld [smem:[#allocation0]]
  $region78: #{tpu_custom_call.1} parent=0
    _
  %s14 = ssub.s32 1, %s12
  %s15 = scalar_select 0, %s14, %s12
  %v16 = vstv %s8
  %17 = vst [vmem:[#allocation2] sm:$0x1] %v16
  $region1: #{tpu_custom_call.1} parent=0
    #allocation3 [shape = 'u8[16384]{0}', space=vmem, size = 0x4000, scoped, tag = 'input window, operand 0, single buffered']
    #allocation4 [shape = 's32[1]{0}', space=sflag, size = 0x4, scoped, tag = 'scoped memory for tpu_custom_call.1']
    #allocation5 [shape = 's32[1]{0}', space=sflag, size = 0x4, scoped, tag = 'scoped memory for tpu_custom_call.1']
    #allocation6 [shape = 'u8[1048576]{0}', space=vmem, size = 0x100000, scoped, tag = 'input window, operand 1, single buffered']
    #allocation7 [shape = 's32[1]{0}', space=sflag, size = 0x4, scoped, tag = 'scoped memory for tpu_custom_call.1']
    #allocation8 [shape = 'u8[2048]{0}', space=vmem, size = 0x800, scoped, tag = 'input window, operand 2, single buffered']
    #allocation9 [shape = 'u8[131072]{0}', space=vmem, size = 0x20000, scoped, tag = 'input window, operand 3, single buffered']
    #allocation10 [shape = 's32[1]{0}', space=sflag, size = 0x4, scoped, tag = 'scoped memory for tpu_custom_call.1']
    #allocation11 [shape = 'u8[32768]{0}', space=vmem, size = 0x8000, scoped, tag = 'input window, operand 5, single buffered']
    #allocation12 [shape = 'u8[65536]{0}', space=vmem, size = 0x10000, scoped, tag = 'input window, operand 9, single buffered']
    #allocation13 [shape = 's32[1]{0}', space=sflag, size = 0x4, scoped, tag = 'scoped memory for tpu_custom_call.1']
    #allocation14 [shape = 'u8[8192]{0}', space=vmem, size = 0x2000, scoped, tag = 'output window, operand 0, single buffered']
    %18 = vsyncpa [#allocation4], 0
    %19 = vsyncpa [#allocation7], 0
    %20 = vsyncpa [#allocation10], 0
    %21 = vsyncpa [#allocation13], 0
    %22 = vsyncpa [#allocation5], 0
    // Predicated region
    $region2: #{tpu_custom_call.1} parent=1 // pred_check
      _
    $region3: #{tpu_custom_call.1} parent=1 // pred_check_branch
      %24 = sbr.rel (0) target = $region5
    $region4: #{tpu_custom_call.1} parent=1 // pred_region
      %26 = vsyncadd [#allocation4], 0
      %s28 = sshll.u32 %s0, 4
      %s29 = int_to_ptr.hbm [resolvable:$true] %s28
      %s30 = sshll.u32 [#allocation3], 4
      %s31 = int_to_ptr.vmem [resolvable:$true] %s30
      %33 = dma.hbm_to_vmem [thread:$0]  %s29, 512, %s31, [#allocation4]
    $region5: #{tpu_custom_call.1} parent=1 // pred_fallthru
      _
    // Predicated region
    $region6: #{tpu_custom_call.1} parent=1 // pred_check
      _
    $region7: #{tpu_custom_call.1} parent=1 // pred_check_branch
      %35 = sbr.rel (0) target = $region9
    $region8: #{tpu_custom_call.1} parent=1 // pred_region
      %37 = vsyncadd [#allocation7], 0
      %s38 = sshll.u32 %s1, 4
      %s39 = int_to_ptr.hbm [resolvable:$true] %s38
      %s40 = sshll.u32 [#allocation6], 4
      %s41 = int_to_ptr.vmem [resolvable:$true] %s40
      %46 = dma.hbm_to_vmem [thread:$0]  %s39, 32768, %s41, [#allocation7], 256, 256, 16
    $region9: #{tpu_custom_call.1} parent=1 // pred_fallthru
      _
    // Predicated region
    $region10: #{tpu_custom_call.1} parent=1 // pred_check
      _
    $region11: #{tpu_custom_call.1} parent=1 // pred_check_branch
      %48 = sbr.rel (0) target = $region13
    $region12: #{tpu_custom_call.1} parent=1 // pred_region
      %50 = vsyncadd [#allocation7], 0
      %s52 = sshll.u32 %s2, 4
      %s53 = int_to_ptr.hbm [resolvable:$true] %s52
      %s54 = sshll.u32 [#allocation8], 4
      %s55 = int_to_ptr.vmem [resolvable:$true] %s54
      %57 = dma.hbm_to_vmem [thread:$0]  %s53, 64, %s55, [#allocation7]
    $region13: #{tpu_custom_call.1} parent=1 // pred_fallthru
      _
    // Predicated region
    $region14: #{tpu_custom_call.1} parent=1 // pred_check
      _
    $region15: #{tpu_custom_call.1} parent=1 // pred_check_branch
      %59 = sbr.rel (0) target = $region17
    $region16: #{tpu_custom_call.1} parent=1 // pred_region
      %61 = vsyncadd [#allocation10], 0
      %s62 = sshll.u32 %s3, 4
      %s63 = int_to_ptr.hbm [resolvable:$true] %s62
      %s64 = sshll.u32 [#allocation9], 4
      %s65 = int_to_ptr.vmem [resolvable:$true] %s64
      %70 = dma.hbm_to_vmem [thread:$0]  %s63, 4096, %s65, [#allocation10], 64, 64, 4
    $region17: #{tpu_custom_call.1} parent=1 // pred_fallthru
      _
    // Predicated region
    $region18: #{tpu_custom_call.1} parent=1 // pred_check
      _
    $region19: #{tpu_custom_call.1} parent=1 // pred_check_branch
      %72 = sbr.rel (0) target = $region21
    $region20: #{tpu_custom_call.1} parent=1 // pred_region
      _
    $region21: #{tpu_custom_call.1} parent=1 // pred_fallthru
      _
    // Predicated region
    $region22: #{tpu_custom_call.1} parent=1 // pred_check
      _
    $region23: #{tpu_custom_call.1} parent=1 // pred_check_branch
      %74 = sbr.rel (0) target = $region25
    $region24: #{tpu_custom_call.1} parent=1 // pred_region
      %76 = vsyncadd [#allocation10], 0
      %s77 = sshll.u32 %s5, 4
      %s78 = int_to_ptr.hbm [resolvable:$true] %s77
      %s79 = sshll.u32 [#allocation11], 4
      %s80 = int_to_ptr.vmem [resolvable:$true] %s79
      %85 = dma.hbm_to_vmem [thread:$0]  %s78, 1024, %s80, [#allocation10], 64, 64, 4
    $region25: #{tpu_custom_call.1} parent=1 // pred_fallthru
      _
    // Predicated region
    $region26: #{tpu_custom_call.1} parent=1 // pred_check
      _
    $region27: #{tpu_custom_call.1} parent=1 // pred_check_branch
      %87 = sbr.rel (0) target = $region29
    $region28: #{tpu_custom_call.1} parent=1 // pred_region
      _
    $region29: #{tpu_custom_call.1} parent=1 // pred_fallthru
      _
    // Predicated region
    $region30: #{tpu_custom_call.1} parent=1 // pred_check
      _
    $region31: #{tpu_custom_call.1} parent=1 // pred_check_branch
      %89 = sbr.rel (0) target = $region33
    $region32: #{tpu_custom_call.1} parent=1 // pred_region
      _
    $region33: #{tpu_custom_call.1} parent=1 // pred_fallthru
      _
    // Predicated region
    $region34: #{tpu_custom_call.1} parent=1 // pred_check
      _
    $region35: #{tpu_custom_call.1} parent=1 // pred_check_branch
      %91 = sbr.rel (0) target = $region37
    $region36: #{tpu_custom_call.1} parent=1 // pred_region
      _
    $region37: #{tpu_custom_call.1} parent=1 // pred_fallthru
      _
    // Predicated region
    $region38: #{tpu_custom_call.1} parent=1 // pred_check
      _
    $region39: #{tpu_custom_call.1} parent=1 // pred_check_branch
      %93 = sbr.rel (0) target = $region41
    $region40: #{tpu_custom_call.1} parent=1 // pred_region
      %95 = vsyncadd [#allocation13], 0
      %s96 = sshll.u32 %s9, 4
      %s97 = int_to_ptr.hbm [resolvable:$true] %s96
      %s98 = sshll.u32 [#allocation12], 4
      %s99 = int_to_ptr.vmem [resolvable:$true] %s98
      %104 = dma.hbm_to_vmem [thread:$0]  %s97, 2048, %s99, [#allocation13], 128, 128, 8
    $region41: #{tpu_custom_call.1} parent=1 // pred_fallthru
      _
    // Predicated region
    $region42: #{tpu_custom_call.1} parent=1 // pred_check
      _
    $region43: #{tpu_custom_call.1} parent=1 // pred_check_branch
      %106 = sbr.rel (0) target = $region45
    $region44: #{tpu_custom_call.1} parent=1 // pred_region
      _
    $region45: #{tpu_custom_call.1} parent=1 // pred_fallthru
      _
    // Predicated region
    $region46: #{tpu_custom_call.1} parent=1 // pred_check
      _
    $region47: #{tpu_custom_call.1} parent=1 // pred_check_branch
      %108 = sbr.rel (0) target = $region49
    $region48: #{tpu_custom_call.1} parent=1 // pred_region
      %110 = dma.done [#allocation4], 512
    $region49: #{tpu_custom_call.1} parent=1 // pred_fallthru
      _
    // Predicated region
    $region50: #{tpu_custom_call.1} parent=1 // pred_check
      _
    $region51: #{tpu_custom_call.1} parent=1 // pred_check_branch
      %112 = sbr.rel (0) target = $region53
    $region52: #{tpu_custom_call.1} parent=1 // pred_region
      %114 = dma.done [#allocation7], 32768
    $region53: #{tpu_custom_call.1} parent=1 // pred_fallthru
      _
    // Predicated region
    $region54: #{tpu_custom_call.1} parent=1 // pred_check
      _
    $region55: #{tpu_custom_call.1} parent=1 // pred_check_branch
      %116 = sbr.rel (0) target = $region57
    $region56: #{tpu_custom_call.1} parent=1 // pred_region
      %118 = dma.done [#allocation7], 64
    $region57: #{tpu_custom_call.1} parent=1 // pred_fallthru
      _
    // Predicated region
    $region58: #{tpu_custom_call.1} parent=1 // pred_check
      _
    $region59: #{tpu_custom_call.1} parent=1 // pred_check_branch
      %120 = sbr.rel (0) target = $region61
    $region60: #{tpu_custom_call.1} parent=1 // pred_region
      %122 = dma.done [#allocation10], 4096
    $region61: #{tpu_custom_call.1} parent=1 // pred_fallthru
      _
    // Predicated region
    $region62: #{tpu_custom_call.1} parent=1 // pred_check
      _
    $region63: #{tpu_custom_call.1} parent=1 // pred_check_branch
      %124 = sbr.rel (0) target = $region65
    $region64: #{tpu_custom_call.1} parent=1 // pred_region
      %126 = dma.done [#allocation10], 1024
    $region65: #{tpu_custom_call.1} parent=1 // pred_fallthru
      _
    // Predicated region
    $region66: #{tpu_custom_call.1} parent=1 // pred_check
      _
    $region67: #{tpu_custom_call.1} parent=1 // pred_check_branch
      %128 = sbr.rel (0) target = $region69
    $region68: #{tpu_custom_call.1} parent=1 // pred_region
      %130 = dma.done [#allocation13], 2048
    $region69: #{tpu_custom_call.1} parent=1 // pred_fallthru
      _
    %v131 = vld [vmem:[#allocation3] sm:$0xff]
    %v132 = vld [vmem:[#allocation3 + $0x8] sm:$0xff]
    %v133 = vld [vmem:[#allocation3 + $0x10] sm:$0xff]
    %v134 = vld [vmem:[#allocation3 + $0x18] sm:$0xff]
    %v135 = vld [vmem:[#allocation6] sm:$0xff]
    %v136 = vld [vmem:[#allocation6 + $0x8] sm:$0xff]
    %v137 = vld [vmem:[#allocation6 + $0x10] sm:$0xff]
    %v138 = vld [vmem:[#allocation6 + $0x18] sm:$0xff]
    %v139 = vld [vmem:[#allocation6 + $0x20] sm:$0xff]
    %v140 = vld [vmem:[#allocation6 + $0x28] sm:$0xff]
    %v141 = vld [vmem:[#allocation6 + $0x30] sm:$0xff]
    %v142 = vld [vmem:[#allocation6 + $0x38] sm:$0xff]
    %v143 = vld [vmem:[#allocation6 + $0x40] sm:$0xff]
    %v144 = vld [vmem:[#allocation6 + $0x48] sm:$0xff]
    %v145 = vld [vmem:[#allocation6 + $0x50] sm:$0xff]
    %v146 = vld [vmem:[#allocation6 + $0x58] sm:$0xff]
    %v147 = vld [vmem:[#allocation6 + $0x60] sm:$0xff]
    %v148 = vld [vmem:[#allocation6 + $0x68] sm:$0xff]
    %v149 = vld [vmem:[#allocation6 + $0x70] sm:$0xff]
    %v150 = vld [vmem:[#allocation6 + $0x78] sm:$0xff]
    %v151 = vld [vmem:[#allocation6 + $0x80] sm:$0xff]
    %v152 = vld [vmem:[#allocation6 + $0x88] sm:$0xff]
    %v153 = vld [vmem:[#allocation6 + $0x90] sm:$0xff]
    %v154 = vld [vmem:[#allocation6 + $0x98] sm:$0xff]
    %v155 = vld [vmem:[#allocation6 + $0xa0] sm:$0xff]
    %v156 = vld [vmem:[#allocation6 + $0xa8] sm:$0xff]
    %v157 = vld [vmem:[#allocation6 + $0xb0] sm:$0xff]
    %v158 = vld [vmem:[#allocation6 + $0xb8] sm:$0xff]
    %v159 = vld [vmem:[#allocation6 + $0xc0] sm:$0xff]
    %v160 = vld [vmem:[#allocation6 + $0xc8] sm:$0xff]
    %v161 = vld [vmem:[#allocation6 + $0xd0] sm:$0xff]
    %v162 = vld [vmem:[#allocation6 + $0xd8] sm:$0xff]
    %v163 = vld [vmem:[#allocation6 + $0xe0] sm:$0xff]
    %v164 = vld [vmem:[#allocation6 + $0xe8] sm:$0xff]
    %v165 = vld [vmem:[#allocation6 + $0xf0] sm:$0xff]
    %v166 = vld [vmem:[#allocation6 + $0xf8] sm:$0xff]
    %v167 = vld [vmem:[#allocation6 + $0x100] sm:$0xff]
    %v168 = vld [vmem:[#allocation6 + $0x108] sm:$0xff]
    %v169 = vld [vmem:[#allocation6 + $0x110] sm:$0xff]
    %v170 = vld [vmem:[#allocation6 + $0x118] sm:$0xff]
    %v171 = vld [vmem:[#allocation6 + $0x120] sm:$0xff]
    %v172 = vld [vmem:[#allocation6 + $0x128] sm:$0xff]
    %v173 = vld [vmem:[#allocation6 + $0x130] sm:$0xff]
    %v174 = vld [vmem:[#allocation6 + $0x138] sm:$0xff]
    %v175 = vld [vmem:[#allocation6 + $0x140] sm:$0xff]
    %v176 = vld [vmem:[#allocation6 + $0x148] sm:$0xff]
    %v177 = vld [vmem:[#allocation6 + $0x150] sm:$0xff]
    %v178 = vld [vmem:[#allocation6 + $0x158] sm:$0xff]
    %v179 = vld [vmem:[#allocation6 + $0x160] sm:$0xff]
    %v180 = vld [vmem:[#allocation6 + $0x168] sm:$0xff]
    %v181 = vld [vmem:[#allocation6 + $0x170] sm:$0xff]
    %v182 = vld [vmem:[#allocation6 + $0x178] sm:$0xff]
    %v183 = vld [vmem:[#allocation6 + $0x180] sm:$0xff]
    %v184 = vld [vmem:[#allocation6 + $0x188] sm:$0xff]
    %v185 = vld [vmem:[#allocation6 + $0x190] sm:$0xff]
    %v186 = vld [vmem:[#allocation6 + $0x198] sm:$0xff]
    %v187 = vld [vmem:[#allocation6 + $0x1a0] sm:$0xff]
    %v188 = vld [vmem:[#allocation6 + $0x1a8] sm:$0xff]
    %v189 = vld [vmem:[#allocation6 + $0x1b0] sm:$0xff]
    %v190 = vld [vmem:[#allocation6 + $0x1b8] sm:$0xff]
    %v191 = vld [vmem:[#allocation6 + $0x1c0] sm:$0xff]
    %v192 = vld [vmem:[#allocation6 + $0x1c8] sm:$0xff]
    %v193 = vld [vmem:[#allocation6 + $0x1d0] sm:$0xff]
    %v194 = vld [vmem:[#allocation6 + $0x1d8] sm:$0xff]
    %v195 = vld [vmem:[#allocation6 + $0x1e0] sm:$0xff]
    %v196 = vld [vmem:[#allocation6 + $0x1e8] sm:$0xff]
    %v197 = vld [vmem:[#allocation6 + $0x1f0] sm:$0xff]
    %v198 = vld [vmem:[#allocation6 + $0x1f8] sm:$0xff]
    %v199 = vld [vmem:[#allocation6 + $0x200] sm:$0xff]
    %v200 = vld [vmem:[#allocation6 + $0x208] sm:$0xff]
    %v201 = vld [vmem:[#allocation6 + $0x210] sm:$0xff]
    %v202 = vld [vmem:[#allocation6 + $0x218] sm:$0xff]
    %v203 = vld [vmem:[#allocation6 + $0x220] sm:$0xff]
    %v204 = vld [vmem:[#allocation6 + $0x228] sm:$0xff]
    %v205 = vld [vmem:[#allocation6 + $0x230] sm:$0xff]
    %v206 = vld [vmem:[#allocation6 + $0x238] sm:$0xff]
    %v207 = vld [vmem:[#allocation6 + $0x240] sm:$0xff]
    %v208 = vld [vmem:[#allocation6 + $0x248] sm:$0xff]
    %v209 = vld [vmem:[#allocation6 + $0x250] sm:$0xff]
    %v210 = vld [vmem:[#allocation6 + $0x258] sm:$0xff]
    %v211 = vld [vmem:[#allocation6 + $0x260] sm:$0xff]
    %v212 = vld [vmem:[#allocation6 + $0x268] sm:$0xff]
    %v213 = vld [vmem:[#allocation6 + $0x270] sm:$0xff]
    %v214 = vld [vmem:[#allocation6 + $0x278] sm:$0xff]
    %v215 = vld [vmem:[#allocation6 + $0x280] sm:$0xff]
    %v216 = vld [vmem:[#allocation6 + $0x288] sm:$0xff]
    %v217 = vld [vmem:[#allocation6 + $0x290] sm:$0xff]
    %v218 = vld [vmem:[#allocation6 + $0x298] sm:$0xff]
    %v219 = vld [vmem:[#allocation6 + $0x2a0] sm:$0xff]
    %v220 = vld [vmem:[#allocation6 + $0x2a8] sm:$0xff]
    %v221 = vld [vmem:[#allocation6 + $0x2b0] sm:$0xff]
    %v222 = vld [vmem:[#allocation6 + $0x2b8] sm:$0xff]
    %v223 = vld [vmem:[#allocation6 + $0x2c0] sm:$0xff]
    %v224 = vld [vmem:[#allocation6 + $0x2c8] sm:$0xff]
    %v225 = vld [vmem:[#allocation6 + $0x2d0] sm:$0xff]
    %v226 = vld [vmem:[#allocation6 + $0x2d8] sm:$0xff]
    %v227 = vld [vmem:[#allocation6 + $0x2e0] sm:$0xff]
    %v228 = vld [vmem:[#allocation6 + $0x2e8] sm:$0xff]
    %v229 = vld [vmem:[#allocation6 + $0x2f0] sm:$0xff]
    %v230 = vld [vmem:[#allocation6 + $0x2f8] sm:$0xff]
    %v231 = vld [vmem:[#allocation6 + $0x300] sm:$0xff]
    %v232 = vld [vmem:[#allocation6 + $0x308] sm:$0xff]
    %v233 = vld [vmem:[#allocation6 + $0x310] sm:$0xff]
    %v234 = vld [vmem:[#allocation6 + $0x318] sm:$0xff]
    %v235 = vld [vmem:[#allocation6 + $0x320] sm:$0xff]
    %v236 = vld [vmem:[#allocation6 + $0x328] sm:$0xff]
    %v237 = vld [vmem:[#allocation6 + $0x330] sm:$0xff]
    %v238 = vld [vmem:[#allocation6 + $0x338] sm:$0xff]
    %v239 = vld [vmem:[#allocation6 + $0x340] sm:$0xff]
    %v240 = vld [vmem:[#allocation6 + $0x348] sm:$0xff]
    %v241 = vld [vmem:[#allocation6 + $0x350] sm:$0xff]
    %v242 = vld [vmem:[#allocation6 + $0x358] sm:$0xff]
    %v243 = vld [vmem:[#allocation6 + $0x360] sm:$0xff]
    %v244 = vld [vmem:[#allocation6 + $0x368] sm:$0xff]
    %v245 = vld [vmem:[#allocation6 + $0x370] sm:$0xff]
    %v246 = vld [vmem:[#allocation6 + $0x378] sm:$0xff]
    %v247 = vld [vmem:[#allocation6 + $0x380] sm:$0xff]
    %v248 = vld [vmem:[#allocation6 + $0x388] sm:$0xff]
    %v249 = vld [vmem:[#allocation6 + $0x390] sm:$0xff]
    %v250 = vld [vmem:[#allocation6 + $0x398] sm:$0xff]
    %v251 = vld [vmem:[#allocation6 + $0x3a0] sm:$0xff]
    %v252 = vld [vmem:[#allocation6 + $0x3a8] sm:$0xff]
    %v253 = vld [vmem:[#allocation6 + $0x3b0] sm:$0xff]
    %v254 = vld [vmem:[#allocation6 + $0x3b8] sm:$0xff]
    %v255 = vld [vmem:[#allocation6 + $0x3c0] sm:$0xff]
    %v256 = vld [vmem:[#allocation6 + $0x3c8] sm:$0xff]
    %v257 = vld [vmem:[#allocation6 + $0x3d0] sm:$0xff]
    %v258 = vld [vmem:[#allocation6 + $0x3d8] sm:$0xff]
    %v259 = vld [vmem:[#allocation6 + $0x3e0] sm:$0xff]
    %v260 = vld [vmem:[#allocation6 + $0x3e8] sm:$0xff]
    %v261 = vld [vmem:[#allocation6 + $0x3f0] sm:$0xff]
    %v262 = vld [vmem:[#allocation6 + $0x3f8] sm:$0xff]
    %v263 = vld [vmem:[#allocation6 + $0x400] sm:$0xff]
    %v264 = vld [vmem:[#allocation6 + $0x408] sm:$0xff]
    %v265 = vld [vmem:[#allocation6 + $0x410] sm:$0xff]
    %v266 = vld [vmem:[#allocation6 + $0x418] sm:$0xff]
    %v267 = vld [vmem:[#allocation6 + $0x420] sm:$0xff]
    %v268 = vld [vmem:[#allocation6 + $0x428] sm:$0xff]
    %v269 = vld [vmem:[#allocation6 + $0x430] sm:$0xff]
    %v270 = vld [vmem:[#allocation6 + $0x438] sm:$0xff]
    %v271 = vld [vmem:[#allocation6 + $0x440] sm:$0xff]
    %v272 = vld [vmem:[#allocation6 + $0x448] sm:$0xff]
    %v273 = vld [vmem:[#allocation6 + $0x450] sm:$0xff]
    %v274 = vld [vmem:[#allocation6 + $0x458] sm:$0xff]
    %v275 = vld [vmem:[#allocation6 + $0x460] sm:$0xff]
    %v276 = vld [vmem:[#allocation6 + $0x468] sm:$0xff]
    %v277 = vld [vmem:[#allocation6 + $0x470] sm:$0xff]
    %v278 = vld [vmem:[#allocation6 + $0x478] sm:$0xff]
    %v279 = vld [vmem:[#allocation6 + $0x480] sm:$0xff]
    %v280 = vld [vmem:[#allocation6 + $0x488] sm:$0xff]
    %v281 = vld [vmem:[#allocation6 + $0x490] sm:$0xff]
    %v282 = vld [vmem:[#allocation6 + $0x498] sm:$0xff]
    %v283 = vld [vmem:[#allocation6 + $0x4a0] sm:$0xff]
    %v284 = vld [vmem:[#allocation6 + $0x4a8] sm:$0xff]
    %v285 = vld [vmem:[#allocation6 + $0x4b0] sm:$0xff]
    %v286 = vld [vmem:[#allocation6 + $0x4b8] sm:$0xff]
    %v287 = vld [vmem:[#allocation6 + $0x4c0] sm:$0xff]
    %v288 = vld [vmem:[#allocation6 + $0x4c8] sm:$0xff]
    %v289 = vld [vmem:[#allocation6 + $0x4d0] sm:$0xff]
    %v290 = vld [vmem:[#allocation6 + $0x4d8] sm:$0xff]
    %v291 = vld [vmem:[#allocation6 + $0x4e0] sm:$0xff]
    %v292 = vld [vmem:[#allocation6 + $0x4e8] sm:$0xff]
    %v293 = vld [vmem:[#allocation6 + $0x4f0] sm:$0xff]
    %v294 = vld [vmem:[#allocation6 + $0x4f8] sm:$0xff]
    %v295 = vld [vmem:[#allocation6 + $0x500] sm:$0xff]
    %v296 = vld [vmem:[#allocation6 + $0x508] sm:$0xff]
    %v297 = vld [vmem:[#allocation6 + $0x510] sm:$0xff]
    %v298 = vld [vmem:[#allocation6 + $0x518] sm:$0xff]
    %v299 = vld [vmem:[#allocation6 + $0x520] sm:$0xff]
    %v300 = vld [vmem:[#allocation6 + $0x528] sm:$0xff]
    %v301 = vld [vmem:[#allocation6 + $0x530] sm:$0xff]
    %v302 = vld [vmem:[#allocation6 + $0x538] sm:$0xff]
    %v303 = vld [vmem:[#allocation6 + $0x540] sm:$0xff]
    %v304 = vld [vmem:[#allocation6 + $0x548] sm:$0xff]
    %v305 = vld [vmem:[#allocation6 + $0x550] sm:$0xff]
    %v306 = vld [vmem:[#allocation6 + $0x558] sm:$0xff]
    %v307 = vld [vmem:[#allocation6 + $0x560] sm:$0xff]
    %v308 = vld [vmem:[#allocation6 + $0x568] sm:$0xff]
    %v309 = vld [vmem:[#allocation6 + $0x570] sm:$0xff]
    %v310 = vld [vmem:[#allocation6 + $0x578] sm:$0xff]
    %v311 = vld [vmem:[#allocation6 + $0x580] sm:$0xff]
    %v312 = vld [vmem:[#allocation6 + $0x588] sm:$0xff]
    %v313 = vld [vmem:[#allocation6 + $0x590] sm:$0xff]
    %v314 = vld [vmem:[#allocation6 + $0x598] sm:$0xff]
    %v315 = vld [vmem:[#allocation6 + $0x5a0] sm:$0xff]
    %v316 = vld [vmem:[#allocation6 + $0x5a8] sm:$0xff]
    %v317 = vld [vmem:[#allocation6 + $0x5b0] sm:$0xff]
    %v318 = vld [vmem:[#allocation6 + $0x5b8] sm:$0xff]
    %v319 = vld [vmem:[#allocation6 + $0x5c0] sm:$0xff]
    %v320 = vld [vmem:[#allocation6 + $0x5c8] sm:$0xff]
    %v321 = vld [vmem:[#allocation6 + $0x5d0] sm:$0xff]
    %v322 = vld [vmem:[#allocation6 + $0x5d8] sm:$0xff]
    %v323 = vld [vmem:[#allocation6 + $0x5e0] sm:$0xff]
    %v324 = vld [vmem:[#allocation6 + $0x5e8] sm:$0xff]
    %v325 = vld [vmem:[#allocation6 + $0x5f0] sm:$0xff]
    %v326 = vld [vmem:[#allocation6 + $0x5f8] sm:$0xff]
    %v327 = vld [vmem:[#allocation6 + $0x600] sm:$0xff]
    %v328 = vld [vmem:[#allocation6 + $0x608] sm:$0xff]
    %v329 = vld [vmem:[#allocation6 + $0x610] sm:$0xff]
    %v330 = vld [vmem:[#allocation6 + $0x618] sm:$0xff]
    %v331 = vld [vmem:[#allocation6 + $0x620] sm:$0xff]
    %v332 = vld [vmem:[#allocation6 + $0x628] sm:$0xff]
    %v333 = vld [vmem:[#allocation6 + $0x630] sm:$0xff]
    %v334 = vld [vmem:[#allocation6 + $0x638] sm:$0xff]
    %v335 = vld [vmem:[#allocation6 + $0x640] sm:$0xff]
    %v336 = vld [vmem:[#allocation6 + $0x648] sm:$0xff]
    %v337 = vld [vmem:[#allocation6 + $0x650] sm:$0xff]
    %v338 = vld [vmem:[#allocation6 + $0x658] sm:$0xff]
    %v339 = vld [vmem:[#allocation6 + $0x660] sm:$0xff]
    %v340 = vld [vmem:[#allocation6 + $0x668] sm:$0xff]
    %v341 = vld [vmem:[#allocation6 + $0x670] sm:$0xff]
    %v342 = vld [vmem:[#allocation6 + $0x678] sm:$0xff]
    %v343 = vld [vmem:[#allocation6 + $0x680] sm:$0xff]
    %v344 = vld [vmem:[#allocation6 + $0x688] sm:$0xff]
    %v345 = vld [vmem:[#allocation6 + $0x690] sm:$0xff]
    %v346 = vld [vmem:[#allocation6 + $0x698] sm:$0xff]
    %v347 = vld [vmem:[#allocation6 + $0x6a0] sm:$0xff]
    %v348 = vld [vmem:[#allocation6 + $0x6a8] sm:$0xff]
    %v349 = vld [vmem:[#allocation6 + $0x6b0] sm:$0xff]
    %v350 = vld [vmem:[#allocation6 + $0x6b8] sm:$0xff]
    %v351 = vld [vmem:[#allocation6 + $0x6c0] sm:$0xff]
    %v352 = vld [vmem:[#allocation6 + $0x6c8] sm:$0xff]
    %v353 = vld [vmem:[#allocation6 + $0x6d0] sm:$0xff]
    %v354 = vld [vmem:[#allocation6 + $0x6d8] sm:$0xff]
    %v355 = vld [vmem:[#allocation6 + $0x6e0] sm:$0xff]
    %v356 = vld [vmem:[#allocation6 + $0x6e8] sm:$0xff]
    %v357 = vld [vmem:[#allocation6 + $0x6f0] sm:$0xff]
    %v358 = vld [vmem:[#allocation6 + $0x6f8] sm:$0xff]
    %v359 = vld [vmem:[#allocation6 + $0x700] sm:$0xff]
    %v360 = vld [vmem:[#allocation6 + $0x708] sm:$0xff]
    %v361 = vld [vmem:[#allocation6 + $0x710] sm:$0xff]
    %v362 = vld [vmem:[#allocation6 + $0x718] sm:$0xff]
    %v363 = vld [vmem:[#allocation6 + $0x720] sm:$0xff]
    %v364 = vld [vmem:[#allocation6 + $0x728] sm:$0xff]
    %v365 = vld [vmem:[#allocation6 + $0x730] sm:$0xff]
    %v366 = vld [vmem:[#allocation6 + $0x738] sm:$0xff]
    %v367 = vld [vmem:[#allocation6 + $0x740] sm:$0xff]
    %v368 = vld [vmem:[#allocation6 + $0x748] sm:$0xff]
    %v369 = vld [vmem:[#allocation6 + $0x750] sm:$0xff]
    %v370 = vld [vmem:[#allocation6 + $0x758] sm:$0xff]
    %v371 = vld [vmem:[#allocation6 + $0x760] sm:$0xff]
    %v372 = vld [vmem:[#allocation6 + $0x768] sm:$0xff]
    %v373 = vld [vmem:[#allocation6 + $0x770] sm:$0xff]
    %v374 = vld [vmem:[#allocation6 + $0x778] sm:$0xff]
    %v375 = vld [vmem:[#allocation6 + $0x780] sm:$0xff]
    %v376 = vld [vmem:[#allocation6 + $0x788] sm:$0xff]
    %v377 = vld [vmem:[#allocation6 + $0x790] sm:$0xff]
    %v378 = vld [vmem:[#allocation6 + $0x798] sm:$0xff]
    %v379 = vld [vmem:[#allocation6 + $0x7a0] sm:$0xff]
    %v380 = vld [vmem:[#allocation6 + $0x7a8] sm:$0xff]
    %v381 = vld [vmem:[#allocation6 + $0x7b0] sm:$0xff]
    %v382 = vld [vmem:[#allocation6 + $0x7b8] sm:$0xff]
    %v383 = vld [vmem:[#allocation6 + $0x7c0] sm:$0xff]
    %v384 = vld [vmem:[#allocation6 + $0x7c8] sm:$0xff]
    %v385 = vld [vmem:[#allocation6 + $0x7d0] sm:$0xff]
    %v386 = vld [vmem:[#allocation6 + $0x7d8] sm:$0xff]
    %v387 = vld [vmem:[#allocation6 + $0x7e0] sm:$0xff]
    %v388 = vld [vmem:[#allocation6 + $0x7e8] sm:$0xff]
    %v389 = vld [vmem:[#allocation6 + $0x7f0] sm:$0xff]
    %v390 = vld [vmem:[#allocation6 + $0x7f8] sm:$0xff]
    %v391 = vld [vmem:[#allocation8] sm:$0xf]
    %v393 = vperm.slane %v391, 0
    %v394 = vperm.slane %v391, 1
    %v395 = vperm.slane %v391, 2
    %v396 = vperm.slane %v391, 3
    %v405 = vunpack.c.l.b16 %v131
    %v406 = vunpack.c.h.b16 %v131
    %v407 = vunpack.c.l.b16 %v132
    %v408 = vunpack.c.h.b16 %v132
    %v409 = vunpack.c.l.b16 %v133
    %v410 = vunpack.c.h.b16 %v133
    %v411 = vunpack.c.l.b16 %v134
    %v412 = vunpack.c.h.b16 %v134
    %v413 = vpack.c.b16 %v405, %v405
    %v414 = vpack.c.b16 %v406, %v406
    %v415 = vpack.c.b16 %v407, %v407
    %v416 = vpack.c.b16 %v408, %v408
    %v417 = vpack.c.b16 %v409, %v409
    %v418 = vpack.c.b16 %v410, %v410
    %v419 = vpack.c.b16 %v411, %v411
    %v420 = vpack.c.b16 %v412, %v412
    %v685 = vunpack.c.l.b16 %v135
    %v686 = vunpack.c.h.b16 %v135
    %v687 = vunpack.c.l.b16 %v136
    %v688 = vunpack.c.h.b16 %v136
    %v689 = vunpack.c.l.b16 %v137
    %v690 = vunpack.c.h.b16 %v137
    %v691 = vunpack.c.l.b16 %v138
    %v692 = vunpack.c.h.b16 %v138
    %v693 = vunpack.c.l.b16 %v139
    %v694 = vunpack.c.h.b16 %v139
    %v695 = vunpack.c.l.b16 %v140
    %v696 = vunpack.c.h.b16 %v140
    %v697 = vunpack.c.l.b16 %v141
    %v698 = vunpack.c.h.b16 %v141
    %v699 = vunpack.c.l.b16 %v142
    %v700 = vunpack.c.h.b16 %v142
    %v701 = vunpack.c.l.b16 %v143
    %v702 = vunpack.c.h.b16 %v143
    %v703 = vunpack.c.l.b16 %v144
    %v704 = vunpack.c.h.b16 %v144
    %v705 = vunpack.c.l.b16 %v145
    %v706 = vunpack.c.h.b16 %v145
    %v707 = vunpack.c.l.b16 %v146
    %v708 = vunpack.c.h.b16 %v146
    %v709 = vunpack.c.l.b16 %v147
    %v710 = vunpack.c.h.b16 %v147
    %v711 = vunpack.c.l.b16 %v148
    %v712 = vunpack.c.h.b16 %v148
    %v713 = vunpack.c.l.b16 %v149
    %v714 = vunpack.c.h.b16 %v149
    %v715 = vunpack.c.l.b16 %v150
    %v716 = vunpack.c.h.b16 %v150
    %v717 = vunpack.c.l.b16 %v151
    %v718 = vunpack.c.h.b16 %v151
    %v719 = vunpack.c.l.b16 %v152
    %v720 = vunpack.c.h.b16 %v152
    %v721 = vunpack.c.l.b16 %v153
    %v722 = vunpack.c.h.b16 %v153
    %v723 = vunpack.c.l.b16 %v154
    %v724 = vunpack.c.h.b16 %v154
    %v725 = vunpack.c.l.b16 %v155
    %v726 = vunpack.c.h.b16 %v155
    %v727 = vunpack.c.l.b16 %v156
    %v728 = vunpack.c.h.b16 %v156
    %v729 = vunpack.c.l.b16 %v157
    %v730 = vunpack.c.h.b16 %v157
    %v731 = vunpack.c.l.b16 %v158
    %v732 = vunpack.c.h.b16 %v158
    %v733 = vunpack.c.l.b16 %v159
    %v734 = vunpack.c.h.b16 %v159
    %v735 = vunpack.c.l.b16 %v160
    %v736 = vunpack.c.h.b16 %v160
    %v737 = vunpack.c.l.b16 %v161
    %v738 = vunpack.c.h.b16 %v161
    %v739 = vunpack.c.l.b16 %v162
    %v740 = vunpack.c.h.b16 %v162
    %v741 = vunpack.c.l.b16 %v163
    %v742 = vunpack.c.h.b16 %v163
    %v743 = vunpack.c.l.b16 %v164
    %v744 = vunpack.c.h.b16 %v164
    %v745 = vunpack.c.l.b16 %v165
    %v746 = vunpack.c.h.b16 %v165
    %v747 = vunpack.c.l.b16 %v166
    %v748 = vunpack.c.h.b16 %v166
    %v749 = vunpack.c.l.b16 %v167
    %v750 = vunpack.c.h.b16 %v167
    %v751 = vunpack.c.l.b16 %v168
    %v752 = vunpack.c.h.b16 %v168
    %v753 = vunpack.c.l.b16 %v169
    %v754 = vunpack.c.h.b16 %v169
    %v755 = vunpack.c.l.b16 %v170
    %v756 = vunpack.c.h.b16 %v170
    %v757 = vunpack.c.l.b16 %v171
    %v758 = vunpack.c.h.b16 %v171
    %v759 = vunpack.c.l.b16 %v172
    %v760 = vunpack.c.h.b16 %v172
    %v761 = vunpack.c.l.b16 %v173
    %v762 = vunpack.c.h.b16 %v173
    %v763 = vunpack.c.l.b16 %v174
    %v764 = vunpack.c.h.b16 %v174
    %v765 = vunpack.c.l.b16 %v175
    %v766 = vunpack.c.h.b16 %v175
    %v767 = vunpack.c.l.b16 %v176
    %v768 = vunpack.c.h.b16 %v176
    %v769 = vunpack.c.l.b16 %v177
    %v770 = vunpack.c.h.b16 %v177
    %v771 = vunpack.c.l.b16 %v178
    %v772 = vunpack.c.h.b16 %v178
    %v773 = vunpack.c.l.b16 %v179
    %v774 = vunpack.c.h.b16 %v179
    %v775 = vunpack.c.l.b16 %v180
    %v776 = vunpack.c.h.b16 %v180
    %v777 = vunpack.c.l.b16 %v181
    %v778 = vunpack.c.h.b16 %v181
    %v779 = vunpack.c.l.b16 %v182
    %v780 = vunpack.c.h.b16 %v182
    %v781 = vunpack.c.l.b16 %v183
    %v782 = vunpack.c.h.b16 %v183
    %v783 = vunpack.c.l.b16 %v184
    %v784 = vunpack.c.h.b16 %v184
    %v785 = vunpack.c.l.b16 %v185
    %v786 = vunpack.c.h.b16 %v185
    %v787 = vunpack.c.l.b16 %v186
    %v788 = vunpack.c.h.b16 %v186
    %v789 = vunpack.c.l.b16 %v187
    %v790 = vunpack.c.h.b16 %v187
    %v791 = vunpack.c.l.b16 %v188
    %v792 = vunpack.c.h.b16 %v188
    %v793 = vunpack.c.l.b16 %v189
    %v794 = vunpack.c.h.b16 %v189
    %v795 = vunpack.c.l.b16 %v190
    %v796 = vunpack.c.h.b16 %v190
    %v797 = vunpack.c.l.b16 %v191
    %v798 = vunpack.c.h.b16 %v191
    %v799 = vunpack.c.l.b16 %v192
    %v800 = vunpack.c.h.b16 %v192
    %v801 = vunpack.c.l.b16 %v193
    %v802 = vunpack.c.h.b16 %v193
    %v803 = vunpack.c.l.b16 %v194
    %v804 = vunpack.c.h.b16 %v194
    %v805 = vunpack.c.l.b16 %v195
    %v806 = vunpack.c.h.b16 %v195
    %v807 = vunpack.c.l.b16 %v196
    %v808 = vunpack.c.h.b16 %v196
    %v809 = vunpack.c.l.b16 %v197
    %v810 = vunpack.c.h.b16 %v197
    %v811 = vunpack.c.l.b16 %v198
    %v812 = vunpack.c.h.b16 %v198
    %v813 = vunpack.c.l.b16 %v199
    %v814 = vunpack.c.h.b16 %v199
    %v815 = vunpack.c.l.b16 %v200
    %v816 = vunpack.c.h.b16 %v200
    %v817 = vunpack.c.l.b16 %v201
    %v818 = vunpack.c.h.b16 %v201
    %v819 = vunpack.c.l.b16 %v202
    %v820 = vunpack.c.h.b16 %v202
    %v821 = vunpack.c.l.b16 %v203
    %v822 = vunpack.c.h.b16 %v203
    %v823 = vunpack.c.l.b16 %v204
    %v824 = vunpack.c.h.b16 %v204
    %v825 = vunpack.c.l.b16 %v205
    %v826 = vunpack.c.h.b16 %v205
    %v827 = vunpack.c.l.b16 %v206
    %v828 = vunpack.c.h.b16 %v206
    %v829 = vunpack.c.l.b16 %v207
    %v830 = vunpack.c.h.b16 %v207
    %v831 = vunpack.c.l.b16 %v208
    %v832 = vunpack.c.h.b16 %v208
    %v833 = vunpack.c.l.b16 %v209
    %v834 = vunpack.c.h.b16 %v209
    %v835 = vunpack.c.l.b16 %v210
    %v836 = vunpack.c.h.b16 %v210
    %v837 = vunpack.c.l.b16 %v211
    %v838 = vunpack.c.h.b16 %v211
    %v839 = vunpack.c.l.b16 %v212
    %v840 = vunpack.c.h.b16 %v212
    %v841 = vunpack.c.l.b16 %v213
    %v842 = vunpack.c.h.b16 %v213
    %v843 = vunpack.c.l.b16 %v214
    %v844 = vunpack.c.h.b16 %v214
    %v845 = vunpack.c.l.b16 %v215
    %v846 = vunpack.c.h.b16 %v215
    %v847 = vunpack.c.l.b16 %v216
    %v848 = vunpack.c.h.b16 %v216
    %v849 = vunpack.c.l.b16 %v217
    %v850 = vunpack.c.h.b16 %v217
    %v851 = vunpack.c.l.b16 %v218
    %v852 = vunpack.c.h.b16 %v218
    %v853 = vunpack.c.l.b16 %v219
    %v854 = vunpack.c.h.b16 %v219
    %v855 = vunpack.c.l.b16 %v220
    %v856 = vunpack.c.h.b16 %v220
    %v857 = vunpack.c.l.b16 %v221
    %v858 = vunpack.c.h.b16 %v221
    %v859 = vunpack.c.l.b16 %v222
    %v860 = vunpack.c.h.b16 %v222
    %v861 = vunpack.c.l.b16 %v223
    %v862 = vunpack.c.h.b16 %v223
    %v863 = vunpack.c.l.b16 %v224
    %v864 = vunpack.c.h.b16 %v224
    %v865 = vunpack.c.l.b16 %v225
    %v866 = vunpack.c.h.b16 %v225
    %v867 = vunpack.c.l.b16 %v226
    %v868 = vunpack.c.h.b16 %v226
    %v869 = vunpack.c.l.b16 %v227
    %v870 = vunpack.c.h.b16 %v227
    %v871 = vunpack.c.l.b16 %v228
    %v872 = vunpack.c.h.b16 %v228
    %v873 = vunpack.c.l.b16 %v229
    %v874 = vunpack.c.h.b16 %v229
    %v875 = vunpack.c.l.b16 %v230
    %v876 = vunpack.c.h.b16 %v230
    %v877 = vunpack.c.l.b16 %v231
    %v878 = vunpack.c.h.b16 %v231
    %v879 = vunpack.c.l.b16 %v232
    %v880 = vunpack.c.h.b16 %v232
    %v881 = vunpack.c.l.b16 %v233
    %v882 = vunpack.c.h.b16 %v233
    %v883 = vunpack.c.l.b16 %v234
    %v884 = vunpack.c.h.b16 %v234
    %v885 = vunpack.c.l.b16 %v235
    %v886 = vunpack.c.h.b16 %v235
    %v887 = vunpack.c.l.b16 %v236
    %v888 = vunpack.c.h.b16 %v236
    %v889 = vunpack.c.l.b16 %v237
    %v890 = vunpack.c.h.b16 %v237
    %v891 = vunpack.c.l.b16 %v238
    %v892 = vunpack.c.h.b16 %v238
    %v893 = vunpack.c.l.b16 %v239
    %v894 = vunpack.c.h.b16 %v239
    %v895 = vunpack.c.l.b16 %v240
    %v896 = vunpack.c.h.b16 %v240
    %v897 = vunpack.c.l.b16 %v241
    %v898 = vunpack.c.h.b16 %v241
    %v899 = vunpack.c.l.b16 %v242
    %v900 = vunpack.c.h.b16 %v242
    %v901 = vunpack.c.l.b16 %v243
    %v902 = vunpack.c.h.b16 %v243
    %v903 = vunpack.c.l.b16 %v244
    %v904 = vunpack.c.h.b16 %v244
    %v905 = vunpack.c.l.b16 %v245
    %v906 = vunpack.c.h.b16 %v245
    %v907 = vunpack.c.l.b16 %v246
    %v908 = vunpack.c.h.b16 %v246
    %v909 = vunpack.c.l.b16 %v247
    %v910 = vunpack.c.h.b16 %v247
    %v911 = vunpack.c.l.b16 %v248
    %v912 = vunpack.c.h.b16 %v248
    %v913 = vunpack.c.l.b16 %v249
    %v914 = vunpack.c.h.b16 %v249
    %v915 = vunpack.c.l.b16 %v250
    %v916 = vunpack.c.h.b16 %v250
    %v917 = vunpack.c.l.b16 %v251
    %v918 = vunpack.c.h.b16 %v251
    %v919 = vunpack.c.l.b16 %v252
    %v920 = vunpack.c.h.b16 %v252
    %v921 = vunpack.c.l.b16 %v253
    %v922 = vunpack.c.h.b16 %v253
    %v923 = vunpack.c.l.b16 %v254
    %v924 = vunpack.c.h.b16 %v254
    %v925 = vunpack.c.l.b16 %v255
    %v926 = vunpack.c.h.b16 %v255
    %v927 = vunpack.c.l.b16 %v256
    %v928 = vunpack.c.h.b16 %v256
    %v929 = vunpack.c.l.b16 %v257
    %v930 = vunpack.c.h.b16 %v257
    %v931 = vunpack.c.l.b16 %v258
    %v932 = vunpack.c.h.b16 %v258
    %v933 = vunpack.c.l.b16 %v259
    %v934 = vunpack.c.h.b16 %v259
    %v935 = vunpack.c.l.b16 %v260
    %v936 = vunpack.c.h.b16 %v260
    %v937 = vunpack.c.l.b16 %v261
    %v938 = vunpack.c.h.b16 %v261
    %v939 = vunpack.c.l.b16 %v262
    %v940 = vunpack.c.h.b16 %v262
    %v941 = vunpack.c.l.b16 %v263
    %v942 = vunpack.c.h.b16 %v263
    %v943 = vunpack.c.l.b16 %v264
    %v944 = vunpack.c.h.b16 %v264
    %v945 = vunpack.c.l.b16 %v265
    %v946 = vunpack.c.h.b16 %v265
    %v947 = vunpack.c.l.b16 %v266
    %v948 = vunpack.c.h.b16 %v266
    %v949 = vunpack.c.l.b16 %v267
    %v950 = vunpack.c.h.b16 %v267
    %v951 = vunpack.c.l.b16 %v268
    %v952 = vunpack.c.h.b16 %v268
    %v953 = vunpack.c.l.b16 %v269
    %v954 = vunpack.c.h.b16 %v269
    %v955 = vunpack.c.l.b16 %v270
    %v956 = vunpack.c.h.b16 %v270
    %v957 = vunpack.c.l.b16 %v271
    %v958 = vunpack.c.h.b16 %v271
    %v959 = vunpack.c.l.b16 %v272
    %v960 = vunpack.c.h.b16 %v272
    %v961 = vunpack.c.l.b16 %v273
    %v962 = vunpack.c.h.b16 %v273
    %v963 = vunpack.c.l.b16 %v274
    %v964 = vunpack.c.h.b16 %v274
    %v965 = vunpack.c.l.b16 %v275
    %v966 = vunpack.c.h.b16 %v275
    %v967 = vunpack.c.l.b16 %v276
    %v968 = vunpack.c.h.b16 %v276
    %v969 = vunpack.c.l.b16 %v277
    %v970 = vunpack.c.h.b16 %v277
    %v971 = vunpack.c.l.b16 %v278
    %v972 = vunpack.c.h.b16 %v278
    %v973 = vunpack.c.l.b16 %v279
    %v974 = vunpack.c.h.b16 %v279
    %v975 = vunpack.c.l.b16 %v280
    %v976 = vunpack.c.h.b16 %v280
    %v977 = vunpack.c.l.b16 %v281
    %v978 = vunpack.c.h.b16 %v281
    %v979 = vunpack.c.l.b16 %v282
    %v980 = vunpack.c.h.b16 %v282
    %v981 = vunpack.c.l.b16 %v283
    %v982 = vunpack.c.h.b16 %v283
    %v983 = vunpack.c.l.b16 %v284
    %v984 = vunpack.c.h.b16 %v284
    %v985 = vunpack.c.l.b16 %v285
    %v986 = vunpack.c.h.b16 %v285
    %v987 = vunpack.c.l.b16 %v286
    %v988 = vunpack.c.h.b16 %v286
    %v989 = vunpack.c.l.b16 %v287
    %v990 = vunpack.c.h.b16 %v287
    %v991 = vunpack.c.l.b16 %v288
    %v992 = vunpack.c.h.b16 %v288
    %v993 = vunpack.c.l.b16 %v289
    %v994 = vunpack.c.h.b16 %v289
    %v995 = vunpack.c.l.b16 %v290
    %v996 = vunpack.c.h.b16 %v290
    %v997 = vunpack.c.l.b16 %v291
    %v998 = vunpack.c.h.b16 %v291
    %v999 = vunpack.c.l.b16 %v292
    %v1000 = vunpack.c.h.b16 %v292
    %v1001 = vunpack.c.l.b16 %v293
    %v1002 = vunpack.c.h.b16 %v293
    %v1003 = vunpack.c.l.b16 %v294
    %v1004 = vunpack.c.h.b16 %v294
    %v1005 = vunpack.c.l.b16 %v295
    %v1006 = vunpack.c.h.b16 %v295
    %v1007 = vunpack.c.l.b16 %v296
    %v1008 = vunpack.c.h.b16 %v296
    %v1009 = vunpack.c.l.b16 %v297
    %v1010 = vunpack.c.h.b16 %v297
    %v1011 = vunpack.c.l.b16 %v298
    %v1012 = vunpack.c.h.b16 %v298
    %v1013 = vunpack.c.l.b16 %v299
    %v1014 = vunpack.c.h.b16 %v299
    %v1015 = vunpack.c.l.b16 %v300
    %v1016 = vunpack.c.h.b16 %v300
    %v1017 = vunpack.c.l.b16 %v301
    %v1018 = vunpack.c.h.b16 %v301
    %v1019 = vunpack.c.l.b16 %v302
    %v1020 = vunpack.c.h.b16 %v302
    %v1021 = vunpack.c.l.b16 %v303
    %v1022 = vunpack.c.h.b16 %v303
    %v1023 = vunpack.c.l.b16 %v304
    %v1024 = vunpack.c.h.b16 %v304
    %v1025 = vunpack.c.l.b16 %v305
    %v1026 = vunpack.c.h.b16 %v305
    %v1027 = vunpack.c.l.b16 %v306
    %v1028 = vunpack.c.h.b16 %v306
    %v1029 = vunpack.c.l.b16 %v307
    %v1030 = vunpack.c.h.b16 %v307
    %v1031 = vunpack.c.l.b16 %v308
    %v1032 = vunpack.c.h.b16 %v308
    %v1033 = vunpack.c.l.b16 %v309
    %v1034 = vunpack.c.h.b16 %v309
    %v1035 = vunpack.c.l.b16 %v310
    %v1036 = vunpack.c.h.b16 %v310
    %v1037 = vunpack.c.l.b16 %v311
    %v1038 = vunpack.c.h.b16 %v311
    %v1039 = vunpack.c.l.b16 %v312
    %v1040 = vunpack.c.h.b16 %v312
    %v1041 = vunpack.c.l.b16 %v313
    %v1042 = vunpack.c.h.b16 %v313
    %v1043 = vunpack.c.l.b16 %v314
    %v1044 = vunpack.c.h.b16 %v314
    %v1045 = vunpack.c.l.b16 %v315
    %v1046 = vunpack.c.h.b16 %v315
    %v1047 = vunpack.c.l.b16 %v316
    %v1048 = vunpack.c.h.b16 %v316
    %v1049 = vunpack.c.l.b16 %v317
    %v1050 = vunpack.c.h.b16 %v317
    %v1051 = vunpack.c.l.b16 %v318
    %v1052 = vunpack.c.h.b16 %v318
    %v1053 = vunpack.c.l.b16 %v319
    %v1054 = vunpack.c.h.b16 %v319
    %v1055 = vunpack.c.l.b16 %v320
    %v1056 = vunpack.c.h.b16 %v320
    %v1057 = vunpack.c.l.b16 %v321
    %v1058 = vunpack.c.h.b16 %v321
    %v1059 = vunpack.c.l.b16 %v322
    %v1060 = vunpack.c.h.b16 %v322
    %v1061 = vunpack.c.l.b16 %v323
    %v1062 = vunpack.c.h.b16 %v323
    %v1063 = vunpack.c.l.b16 %v324
    %v1064 = vunpack.c.h.b16 %v324
    %v1065 = vunpack.c.l.b16 %v325
    %v1066 = vunpack.c.h.b16 %v325
    %v1067 = vunpack.c.l.b16 %v326
    %v1068 = vunpack.c.h.b16 %v326
    %v1069 = vunpack.c.l.b16 %v327
    %v1070 = vunpack.c.h.b16 %v327
    %v1071 = vunpack.c.l.b16 %v328
    %v1072 = vunpack.c.h.b16 %v328
    %v1073 = vunpack.c.l.b16 %v329
    %v1074 = vunpack.c.h.b16 %v329
    %v1075 = vunpack.c.l.b16 %v330
    %v1076 = vunpack.c.h.b16 %v330
    %v1077 = vunpack.c.l.b16 %v331
    %v1078 = vunpack.c.h.b16 %v331
    %v1079 = vunpack.c.l.b16 %v332
    %v1080 = vunpack.c.h.b16 %v332
    %v1081 = vunpack.c.l.b16 %v333
    %v1082 = vunpack.c.h.b16 %v333
    %v1083 = vunpack.c.l.b16 %v334
    %v1084 = vunpack.c.h.b16 %v334
    %v1085 = vunpack.c.l.b16 %v335
    %v1086 = vunpack.c.h.b16 %v335
    %v1087 = vunpack.c.l.b16 %v336
    %v1088 = vunpack.c.h.b16 %v336
    %v1089 = vunpack.c.l.b16 %v337
    %v1090 = vunpack.c.h.b16 %v337
    %v1091 = vunpack.c.l.b16 %v338
    %v1092 = vunpack.c.h.b16 %v338
    %v1093 = vunpack.c.l.b16 %v339
    %v1094 = vunpack.c.h.b16 %v339
    %v1095 = vunpack.c.l.b16 %v340
    %v1096 = vunpack.c.h.b16 %v340
    %v1097 = vunpack.c.l.b16 %v341
    %v1098 = vunpack.c.h.b16 %v341
    %v1099 = vunpack.c.l.b16 %v342
    %v1100 = vunpack.c.h.b16 %v342
    %v1101 = vunpack.c.l.b16 %v343
    %v1102 = vunpack.c.h.b16 %v343
    %v1103 = vunpack.c.l.b16 %v344
    %v1104 = vunpack.c.h.b16 %v344
    %v1105 = vunpack.c.l.b16 %v345
    %v1106 = vunpack.c.h.b16 %v345
    %v1107 = vunpack.c.l.b16 %v346
    %v1108 = vunpack.c.h.b16 %v346
    %v1109 = vunpack.c.l.b16 %v347
    %v1110 = vunpack.c.h.b16 %v347
    %v1111 = vunpack.c.l.b16 %v348
    %v1112 = vunpack.c.h.b16 %v348
    %v1113 = vunpack.c.l.b16 %v349
    %v1114 = vunpack.c.h.b16 %v349
    %v1115 = vunpack.c.l.b16 %v350
    %v1116 = vunpack.c.h.b16 %v350
    %v1117 = vunpack.c.l.b16 %v351
    %v1118 = vunpack.c.h.b16 %v351
    %v1119 = vunpack.c.l.b16 %v352
    %v1120 = vunpack.c.h.b16 %v352
    %v1121 = vunpack.c.l.b16 %v353
    %v1122 = vunpack.c.h.b16 %v353
    %v1123 = vunpack.c.l.b16 %v354
    %v1124 = vunpack.c.h.b16 %v354
    %v1125 = vunpack.c.l.b16 %v355
    %v1126 = vunpack.c.h.b16 %v355
    %v1127 = vunpack.c.l.b16 %v356
    %v1128 = vunpack.c.h.b16 %v356
    %v1129 = vunpack.c.l.b16 %v357
    %v1130 = vunpack.c.h.b16 %v357
    %v1131 = vunpack.c.l.b16 %v358
    %v1132 = vunpack.c.h.b16 %v358
    %v1133 = vunpack.c.l.b16 %v359
    %v1134 = vunpack.c.h.b16 %v359
    %v1135 = vunpack.c.l.b16 %v360
    %v1136 = vunpack.c.h.b16 %v360
    %v1137 = vunpack.c.l.b16 %v361
    %v1138 = vunpack.c.h.b16 %v361
    %v1139 = vunpack.c.l.b16 %v362
    %v1140 = vunpack.c.h.b16 %v362
    %v1141 = vunpack.c.l.b16 %v363
    %v1142 = vunpack.c.h.b16 %v363
    %v1143 = vunpack.c.l.b16 %v364
    %v1144 = vunpack.c.h.b16 %v364
    %v1145 = vunpack.c.l.b16 %v365
    %v1146 = vunpack.c.h.b16 %v365
    %v1147 = vunpack.c.l.b16 %v366
    %v1148 = vunpack.c.h.b16 %v366
    %v1149 = vunpack.c.l.b16 %v367
    %v1150 = vunpack.c.h.b16 %v367
    %v1151 = vunpack.c.l.b16 %v368
    %v1152 = vunpack.c.h.b16 %v368
    %v1153 = vunpack.c.l.b16 %v369
    %v1154 = vunpack.c.h.b16 %v369
    %v1155 = vunpack.c.l.b16 %v370
    %v1156 = vunpack.c.h.b16 %v370
    %v1157 = vunpack.c.l.b16 %v371
    %v1158 = vunpack.c.h.b16 %v371
    %v1159 = vunpack.c.l.b16 %v372
    %v1160 = vunpack.c.h.b16 %v372
    %v1161 = vunpack.c.l.b16 %v373
    %v1162 = vunpack.c.h.b16 %v373
    %v1163 = vunpack.c.l.b16 %v374
    %v1164 = vunpack.c.h.b16 %v374
    %v1165 = vunpack.c.l.b16 %v375
    %v1166 = vunpack.c.h.b16 %v375
    %v1167 = vunpack.c.l.b16 %v376
    %v1168 = vunpack.c.h.b16 %v376
    %v1169 = vunpack.c.l.b16 %v377
    %v1170 = vunpack.c.h.b16 %v377
    %v1171 = vunpack.c.l.b16 %v378
    %v1172 = vunpack.c.h.b16 %v378
    %v1173 = vunpack.c.l.b16 %v379
    %v1174 = vunpack.c.h.b16 %v379
    %v1175 = vunpack.c.l.b16 %v380
    %v1176 = vunpack.c.h.b16 %v380
    %v1177 = vunpack.c.l.b16 %v381
    %v1178 = vunpack.c.h.b16 %v381
    %v1179 = vunpack.c.l.b16 %v382
    %v1180 = vunpack.c.h.b16 %v382
    %v1181 = vunpack.c.l.b16 %v383
    %v1182 = vunpack.c.h.b16 %v383
    %v1183 = vunpack.c.l.b16 %v384
    %v1184 = vunpack.c.h.b16 %v384
    %v1185 = vunpack.c.l.b16 %v385
    %v1186 = vunpack.c.h.b16 %v385
    %v1187 = vunpack.c.l.b16 %v386
    %v1188 = vunpack.c.h.b16 %v386
    %v1189 = vunpack.c.l.b16 %v387
    %v1190 = vunpack.c.h.b16 %v387
    %v1191 = vunpack.c.l.b16 %v388
    %v1192 = vunpack.c.h.b16 %v388
    %v1193 = vunpack.c.l.b16 %v389
    %v1194 = vunpack.c.h.b16 %v389
    %v1195 = vunpack.c.l.b16 %v390
    %v1196 = vunpack.c.h.b16 %v390
    %v1197 = vpack.c.b16 %v689, %v685
    %v1198 = vpack.c.b16 %v690, %v686
    %v1199 = vpack.c.b16 %v691, %v687
    %v1200 = vpack.c.b16 %v692, %v688
    %v1201 = vpack.c.b16 %v697, %v693
    %v1202 = vpack.c.b16 %v698, %v694
    %v1203 = vpack.c.b16 %v699, %v695
    %v1204 = vpack.c.b16 %v700, %v696
    %v1205 = vpack.c.b16 %v705, %v701
    %v1206 = vpack.c.b16 %v706, %v702
    %v1207 = vpack.c.b16 %v707, %v703
    %v1208 = vpack.c.b16 %v708, %v704
    %v1209 = vpack.c.b16 %v713, %v709
    %v1210 = vpack.c.b16 %v714, %v710
    %v1211 = vpack.c.b16 %v715, %v711
    %v1212 = vpack.c.b16 %v716, %v712
    %v1213 = vpack.c.b16 %v721, %v717
    %v1214 = vpack.c.b16 %v722, %v718
    %v1215 = vpack.c.b16 %v723, %v719
    %v1216 = vpack.c.b16 %v724, %v720
    %v1217 = vpack.c.b16 %v729, %v725
    %v1218 = vpack.c.b16 %v730, %v726
    %v1219 = vpack.c.b16 %v731, %v727
    %v1220 = vpack.c.b16 %v732, %v728
    %v1221 = vpack.c.b16 %v737, %v733
    %v1222 = vpack.c.b16 %v738, %v734
    %v1223 = vpack.c.b16 %v739, %v735
    %v1224 = vpack.c.b16 %v740, %v736
    %v1225 = vpack.c.b16 %v745, %v741
    %v1226 = vpack.c.b16 %v746, %v742
    %v1227 = vpack.c.b16 %v747, %v743
    %v1228 = vpack.c.b16 %v748, %v744
    %v1229 = vpack.c.b16 %v753, %v749
    %v1230 = vpack.c.b16 %v754, %v750
    %v1231 = vpack.c.b16 %v755, %v751
    %v1232 = vpack.c.b16 %v756, %v752
    %v1233 = vpack.c.b16 %v761, %v757
    %v1234 = vpack.c.b16 %v762, %v758
    %v1235 = vpack.c.b16 %v763, %v759
    %v1236 = vpack.c.b16 %v764, %v760
    %v1237 = vpack.c.b16 %v769, %v765
    %v1238 = vpack.c.b16 %v770, %v766
    %v1239 = vpack.c.b16 %v771, %v767
    %v1240 = vpack.c.b16 %v772, %v768
    %v1241 = vpack.c.b16 %v777, %v773
    %v1242 = vpack.c.b16 %v778, %v774
    %v1243 = vpack.c.b16 %v779, %v775
    %v1244 = vpack.c.b16 %v780, %v776
    %v1245 = vpack.c.b16 %v785, %v781
    %v1246 = vpack.c.b16 %v786, %v782
    %v1247 = vpack.c.b16 %v787, %v783
    %v1248 = vpack.c.b16 %v788, %v784
    %v1249 = vpack.c.b16 %v793, %v789
    %v1250 = vpack.c.b16 %v794, %v790
    %v1251 = vpack.c.b16 %v795, %v791
    %v1252 = vpack.c.b16 %v796, %v792
    %v1253 = vpack.c.b16 %v801, %v797
    %v1254 = vpack.c.b16 %v802, %v798
    %v1255 = vpack.c.b16 %v803, %v799
    %v1256 = vpack.c.b16 %v804, %v800
    %v1257 = vpack.c.b16 %v809, %v805
    %v1258 = vpack.c.b16 %v810, %v806
    %v1259 = vpack.c.b16 %v811, %v807
    %v1260 = vpack.c.b16 %v812, %v808
    %v1261 = vpack.c.b16 %v817, %v813
    %v1262 = vpack.c.b16 %v818, %v814
    %v1263 = vpack.c.b16 %v819, %v815
    %v1264 = vpack.c.b16 %v820, %v816
    %v1265 = vpack.c.b16 %v825, %v821
    %v1266 = vpack.c.b16 %v826, %v822
    %v1267 = vpack.c.b16 %v827, %v823
    %v1268 = vpack.c.b16 %v828, %v824
    %v1269 = vpack.c.b16 %v833, %v829
    %v1270 = vpack.c.b16 %v834, %v830
    %v1271 = vpack.c.b16 %v835, %v831
    %v1272 = vpack.c.b16 %v836, %v832
    %v1273 = vpack.c.b16 %v841, %v837
    %v1274 = vpack.c.b16 %v842, %v838
    %v1275 = vpack.c.b16 %v843, %v839
    %v1276 = vpack.c.b16 %v844, %v840
    %v1277 = vpack.c.b16 %v849, %v845
    %v1278 = vpack.c.b16 %v850, %v846
    %v1279 = vpack.c.b16 %v851, %v847
    %v1280 = vpack.c.b16 %v852, %v848
    %v1281 = vpack.c.b16 %v857, %v853
    %v1282 = vpack.c.b16 %v858, %v854
    %v1283 = vpack.c.b16 %v859, %v855
    %v1284 = vpack.c.b16 %v860, %v856
    %v1285 = vpack.c.b16 %v865, %v861
    %v1286 = vpack.c.b16 %v866, %v862
    %v1287 = vpack.c.b16 %v867, %v863
    %v1288 = vpack.c.b16 %v868, %v864
    %v1289 = vpack.c.b16 %v873, %v869
    %v1290 = vpack.c.b16 %v874, %v870
    %v1291 = vpack.c.b16 %v875, %v871
    %v1292 = vpack.c.b16 %v876, %v872
    %v1293 = vpack.c.b16 %v881, %v877
    %v1294 = vpack.c.b16 %v882, %v878
    %v1295 = vpack.c.b16 %v883, %v879
    %v1296 = vpack.c.b16 %v884, %v880
    %v1297 = vpack.c.b16 %v889, %v885
    %v1298 = vpack.c.b16 %v890, %v886
    %v1299 = vpack.c.b16 %v891, %v887
    %v1300 = vpack.c.b16 %v892, %v888
    %v1301 = vpack.c.b16 %v897, %v893
    %v1302 = vpack.c.b16 %v898, %v894
    %v1303 = vpack.c.b16 %v899, %v895
    %v1304 = vpack.c.b16 %v900, %v896
    %v1305 = vpack.c.b16 %v905, %v901
    %v1306 = vpack.c.b16 %v906, %v902
    %v1307 = vpack.c.b16 %v907, %v903
    %v1308 = vpack.c.b16 %v908, %v904
    %v1309 = vpack.c.b16 %v913, %v909
    %v1310 = vpack.c.b16 %v914, %v910
    %v1311 = vpack.c.b16 %v915, %v911
    %v1312 = vpack.c.b16 %v916, %v912
    %v1313 = vpack.c.b16 %v921, %v917
    %v1314 = vpack.c.b16 %v922, %v918
    %v1315 = vpack.c.b16 %v923, %v919
    %v1316 = vpack.c.b16 %v924, %v920
    %v1317 = vpack.c.b16 %v929, %v925
    %v1318 = vpack.c.b16 %v930, %v926
    %v1319 = vpack.c.b16 %v931, %v927
    %v1320 = vpack.c.b16 %v932, %v928
    %v1321 = vpack.c.b16 %v937, %v933
    %v1322 = vpack.c.b16 %v938, %v934
    %v1323 = vpack.c.b16 %v939, %v935
    %v1324 = vpack.c.b16 %v940, %v936
    %v1325 = vpack.c.b16 %v945, %v941
    %v1326 = vpack.c.b16 %v946, %v942
    %v1327 = vpack.c.b16 %v947, %v943
    %v1328 = vpack.c.b16 %v948, %v944
    %v1329 = vpack.c.b16 %v953, %v949
    %v1330 = vpack.c.b16 %v954, %v950
    %v1331 = vpack.c.b16 %v955, %v951
    %v1332 = vpack.c.b16 %v956, %v952
    %v1333 = vpack.c.b16 %v961, %v957
    %v1334 = vpack.c.b16 %v962, %v958
    %v1335 = vpack.c.b16 %v963, %v959
    %v1336 = vpack.c.b16 %v964, %v960
    %v1337 = vpack.c.b16 %v969, %v965
    %v1338 = vpack.c.b16 %v970, %v966
    %v1339 = vpack.c.b16 %v971, %v967
    %v1340 = vpack.c.b16 %v972, %v968
    %v1341 = vpack.c.b16 %v977, %v973
    %v1342 = vpack.c.b16 %v978, %v974
    %v1343 = vpack.c.b16 %v979, %v975
    %v1344 = vpack.c.b16 %v980, %v976
    %v1345 = vpack.c.b16 %v985, %v981
    %v1346 = vpack.c.b16 %v986, %v982
    %v1347 = vpack.c.b16 %v987, %v983
    %v1348 = vpack.c.b16 %v988, %v984
    %v1349 = vpack.c.b16 %v993, %v989
    %v1350 = vpack.c.b16 %v994, %v990
    %v1351 = vpack.c.b16 %v995, %v991
    %v1352 = vpack.c.b16 %v996, %v992
    %v1353 = vpack.c.b16 %v1001, %v997
    %v1354 = vpack.c.b16 %v1002, %v998
    %v1355 = vpack.c.b16 %v1003, %v999
    %v1356 = vpack.c.b16 %v1004, %v1000
    %v1357 = vpack.c.b16 %v1009, %v1005
    %v1358 = vpack.c.b16 %v1010, %v1006
    %v1359 = vpack.c.b16 %v1011, %v1007
    %v1360 = vpack.c.b16 %v1012, %v1008
    %v1361 = vpack.c.b16 %v1017, %v1013
    %v1362 = vpack.c.b16 %v1018, %v1014
    %v1363 = vpack.c.b16 %v1019, %v1015
    %v1364 = vpack.c.b16 %v1020, %v1016
    %v1365 = vpack.c.b16 %v1025, %v1021
    %v1366 = vpack.c.b16 %v1026, %v1022
    %v1367 = vpack.c.b16 %v1027, %v1023
    %v1368 = vpack.c.b16 %v1028, %v1024
    %v1369 = vpack.c.b16 %v1033, %v1029
    %v1370 = vpack.c.b16 %v1034, %v1030
    %v1371 = vpack.c.b16 %v1035, %v1031
    %v1372 = vpack.c.b16 %v1036, %v1032
    %v1373 = vpack.c.b16 %v1041, %v1037
    %v1374 = vpack.c.b16 %v1042, %v1038
    %v1375 = vpack.c.b16 %v1043, %v1039
    %v1376 = vpack.c.b16 %v1044, %v1040
    %v1377 = vpack.c.b16 %v1049, %v1045
    %v1378 = vpack.c.b16 %v1050, %v1046
    %v1379 = vpack.c.b16 %v1051, %v1047
    %v1380 = vpack.c.b16 %v1052, %v1048
    %v1381 = vpack.c.b16 %v1057, %v1053
    %v1382 = vpack.c.b16 %v1058, %v1054
    %v1383 = vpack.c.b16 %v1059, %v1055
    %v1384 = vpack.c.b16 %v1060, %v1056
    %v1385 = vpack.c.b16 %v1065, %v1061
    %v1386 = vpack.c.b16 %v1066, %v1062
    %v1387 = vpack.c.b16 %v1067, %v1063
    %v1388 = vpack.c.b16 %v1068, %v1064
    %v1389 = vpack.c.b16 %v1073, %v1069
    %v1390 = vpack.c.b16 %v1074, %v1070
    %v1391 = vpack.c.b16 %v1075, %v1071
    %v1392 = vpack.c.b16 %v1076, %v1072
    %v1393 = vpack.c.b16 %v1081, %v1077
    %v1394 = vpack.c.b16 %v1082, %v1078
    %v1395 = vpack.c.b16 %v1083, %v1079
    %v1396 = vpack.c.b16 %v1084, %v1080
    %v1397 = vpack.c.b16 %v1089, %v1085
    %v1398 = vpack.c.b16 %v1090, %v1086
    %v1399 = vpack.c.b16 %v1091, %v1087
    %v1400 = vpack.c.b16 %v1092, %v1088
    %v1401 = vpack.c.b16 %v1097, %v1093
    %v1402 = vpack.c.b16 %v1098, %v1094
    %v1403 = vpack.c.b16 %v1099, %v1095
    %v1404 = vpack.c.b16 %v1100, %v1096
    %v1405 = vpack.c.b16 %v1105, %v1101
    %v1406 = vpack.c.b16 %v1106, %v1102
    %v1407 = vpack.c.b16 %v1107, %v1103
    %v1408 = vpack.c.b16 %v1108, %v1104
    %v1409 = vpack.c.b16 %v1113, %v1109
    %v1410 = vpack.c.b16 %v1114, %v1110
    %v1411 = vpack.c.b16 %v1115, %v1111
    %v1412 = vpack.c.b16 %v1116, %v1112
    %v1413 = vpack.c.b16 %v1121, %v1117
    %v1414 = vpack.c.b16 %v1122, %v1118
    %v1415 = vpack.c.b16 %v1123, %v1119
    %v1416 = vpack.c.b16 %v1124, %v1120
    %v1417 = vpack.c.b16 %v1129, %v1125
    %v1418 = vpack.c.b16 %v1130, %v1126
    %v1419 = vpack.c.b16 %v1131, %v1127
    %v1420 = vpack.c.b16 %v1132, %v1128
    %v1421 = vpack.c.b16 %v1137, %v1133
    %v1422 = vpack.c.b16 %v1138, %v1134
    %v1423 = vpack.c.b16 %v1139, %v1135
    %v1424 = vpack.c.b16 %v1140, %v1136
    %v1425 = vpack.c.b16 %v1145, %v1141
    %v1426 = vpack.c.b16 %v1146, %v1142
    %v1427 = vpack.c.b16 %v1147, %v1143
    %v1428 = vpack.c.b16 %v1148, %v1144
    %v1429 = vpack.c.b16 %v1153, %v1149
    %v1430 = vpack.c.b16 %v1154, %v1150
    %v1431 = vpack.c.b16 %v1155, %v1151
    %v1432 = vpack.c.b16 %v1156, %v1152
    %v1433 = vpack.c.b16 %v1161, %v1157
    %v1434 = vpack.c.b16 %v1162, %v1158
    %v1435 = vpack.c.b16 %v1163, %v1159
    %v1436 = vpack.c.b16 %v1164, %v1160
    %v1437 = vpack.c.b16 %v1169, %v1165
    %v1438 = vpack.c.b16 %v1170, %v1166
    %v1439 = vpack.c.b16 %v1171, %v1167
    %v1440 = vpack.c.b16 %v1172, %v1168
    %v1441 = vpack.c.b16 %v1177, %v1173
    %v1442 = vpack.c.b16 %v1178, %v1174
    %v1443 = vpack.c.b16 %v1179, %v1175
    %v1444 = vpack.c.b16 %v1180, %v1176
    %v1445 = vpack.c.b16 %v1185, %v1181
    %v1446 = vpack.c.b16 %v1186, %v1182
    %v1447 = vpack.c.b16 %v1187, %v1183
    %v1448 = vpack.c.b16 %v1188, %v1184
    %v1449 = vpack.c.b16 %v1193, %v1189
    %v1450 = vpack.c.b16 %v1194, %v1190
    %v1451 = vpack.c.b16 %v1195, %v1191
    %v1452 = vpack.c.b16 %v1196, %v1192
    %1709 = vmatpush.bf16.msra.mxu0 %v1225
    %1710 = vmatpush.bf16.msra.mxu0 %v1221
    %1711 = vmatpush.bf16.msra.mxu0 %v1217
    %1712 = vmatpush.bf16.msra.mxu0 %v1213
    %1713 = vmatpush.bf16.msra.mxu0 %v1209
    %1714 = vmatpush.bf16.msra.mxu0 %v1205
    %1715 = vmatpush.bf16.msra.mxu0 %v1201
    %1716 = vmatpush.bf16.msra.mxu0 %v1197
    %1717 = vmatmul.bf16.gmra.mxu0 %v413
    %v1718 = vpop.f32.mrf.mxu0
    %v1719 = vadd.f32 %v393, %v1718
    %v1720 = vpop.f32.mrf.mxu0
    %1721 = vdwg.mxu0
    %1722 = vmatpush.bf16.msra.mxu0 %v1257
    %1723 = vmatpush.bf16.msra.mxu0 %v1253
    %1724 = vmatpush.bf16.msra.mxu0 %v1249
    %1725 = vmatpush.bf16.msra.mxu0 %v1245
    %1726 = vmatpush.bf16.msra.mxu0 %v1241
    %1727 = vmatpush.bf16.msra.mxu0 %v1237
    %1728 = vmatpush.bf16.msra.mxu0 %v1233
    %1729 = vmatpush.bf16.msra.mxu0 %v1229
    %1730 = vmatmul.bf16.gmra.mxu0 %v414
    %v1731 = vpop.f32.mrf.mxu0
    %v1732 = vadd.f32 %v1719, %v1731
    %v1733 = vpop.f32.mrf.mxu0
    %1734 = vdwg.mxu0
    %1735 = vmatpush.bf16.msra.mxu0 %v1289
    %1736 = vmatpush.bf16.msra.mxu0 %v1285
    %1737 = vmatpush.bf16.msra.mxu0 %v1281
    %1738 = vmatpush.bf16.msra.mxu0 %v1277
    %1739 = vmatpush.bf16.msra.mxu0 %v1273
    %1740 = vmatpush.bf16.msra.mxu0 %v1269
    %1741 = vmatpush.bf16.msra.mxu0 %v1265
    %1742 = vmatpush.bf16.msra.mxu0 %v1261
    %1743 = vmatmul.bf16.gmra.mxu0 %v415
    %v1744 = vpop.f32.mrf.mxu0
    %v1745 = vadd.f32 %v1732, %v1744
    %v1746 = vpop.f32.mrf.mxu0
    %1747 = vdwg.mxu0
    %1748 = vmatpush.bf16.msra.mxu0 %v1321
    %1749 = vmatpush.bf16.msra.mxu0 %v1317
    %1750 = vmatpush.bf16.msra.mxu0 %v1313
    %1751 = vmatpush.bf16.msra.mxu0 %v1309
    %1752 = vmatpush.bf16.msra.mxu0 %v1305
    %1753 = vmatpush.bf16.msra.mxu0 %v1301
    %1754 = vmatpush.bf16.msra.mxu0 %v1297
    %1755 = vmatpush.bf16.msra.mxu0 %v1293
    %1756 = vmatmul.bf16.gmra.mxu0 %v416
    %v1757 = vpop.f32.mrf.mxu0
    %v1758 = vadd.f32 %v1745, %v1757
    %v1759 = vpop.f32.mrf.mxu0
    %1760 = vdwg.mxu0
    %1761 = vmatpush.bf16.msra.mxu0 %v1353
    %1762 = vmatpush.bf16.msra.mxu0 %v1349
    %1763 = vmatpush.bf16.msra.mxu0 %v1345
    %1764 = vmatpush.bf16.msra.mxu0 %v1341
    %1765 = vmatpush.bf16.msra.mxu0 %v1337
    %1766 = vmatpush.bf16.msra.mxu0 %v1333
    %1767 = vmatpush.bf16.msra.mxu0 %v1329
    %1768 = vmatpush.bf16.msra.mxu0 %v1325
    %1769 = vmatmul.bf16.gmra.mxu0 %v417
    %v1770 = vpop.f32.mrf.mxu0
    %v1771 = vadd.f32 %v1758, %v1770
    %v1772 = vpop.f32.mrf.mxu0
    %1773 = vdwg.mxu0
    %1774 = vmatpush.bf16.msra.mxu0 %v1385
    %1775 = vmatpush.bf16.msra.mxu0 %v1381
    %1776 = vmatpush.bf16.msra.mxu0 %v1377
    %1777 = vmatpush.bf16.msra.mxu0 %v1373
    %1778 = vmatpush.bf16.msra.mxu0 %v1369
    %1779 = vmatpush.bf16.msra.mxu0 %v1365
    %1780 = vmatpush.bf16.msra.mxu0 %v1361
    %1781 = vmatpush.bf16.msra.mxu0 %v1357
    %1782 = vmatmul.bf16.gmra.mxu0 %v418
    %v1783 = vpop.f32.mrf.mxu0
    %v1784 = vadd.f32 %v1771, %v1783
    %v1785 = vpop.f32.mrf.mxu0
    %1786 = vdwg.mxu0
    %1787 = vmatpush.bf16.msra.mxu0 %v1417
    %1788 = vmatpush.bf16.msra.mxu0 %v1413
    %1789 = vmatpush.bf16.msra.mxu0 %v1409
    %1790 = vmatpush.bf16.msra.mxu0 %v1405
    %1791 = vmatpush.bf16.msra.mxu0 %v1401
    %1792 = vmatpush.bf16.msra.mxu0 %v1397
    %1793 = vmatpush.bf16.msra.mxu0 %v1393
    %1794 = vmatpush.bf16.msra.mxu0 %v1389
    %1795 = vmatmul.bf16.gmra.mxu0 %v419
    %v1796 = vpop.f32.mrf.mxu0
    %v1797 = vadd.f32 %v1784, %v1796
    %v1798 = vpop.f32.mrf.mxu0
    %1799 = vdwg.mxu0
    %1800 = vmatpush.bf16.msra.mxu0 %v1449
    %1801 = vmatpush.bf16.msra.mxu0 %v1445
    %1802 = vmatpush.bf16.msra.mxu0 %v1441
    %1803 = vmatpush.bf16.msra.mxu0 %v1437
    %1804 = vmatpush.bf16.msra.mxu0 %v1433
    %1805 = vmatpush.bf16.msra.mxu0 %v1429
    %1806 = vmatpush.bf16.msra.mxu0 %v1425
    %1807 = vmatpush.bf16.msra.mxu0 %v1421
    %1808 = vmatmul.bf16.gmra.mxu0 %v420
    %v1809 = vpop.f32.mrf.mxu0
    %v1810 = vadd.f32 %v1797, %v1809
    %v1811 = vpop.f32.mrf.mxu0
    %1812 = vdwg.mxu0
    %1813 = vmatpush.bf16.msra.mxu0 %v1226
    %1814 = vmatpush.bf16.msra.mxu0 %v1222
    %1815 = vmatpush.bf16.msra.mxu0 %v1218
    %1816 = vmatpush.bf16.msra.mxu0 %v1214
    %1817 = vmatpush.bf16.msra.mxu0 %v1210
    %1818 = vmatpush.bf16.msra.mxu0 %v1206
    %1819 = vmatpush.bf16.msra.mxu0 %v1202
    %1820 = vmatpush.bf16.msra.mxu0 %v1198
    %1821 = vmatmul.bf16.gmra.mxu0 %v413
    %v1822 = vpop.f32.mrf.mxu0
    %v1823 = vadd.f32 %v394, %v1822
    %v1824 = vpop.f32.mrf.mxu0
    %1825 = vdwg.mxu0
    %1826 = vmatpush.bf16.msra.mxu0 %v1258
    %1827 = vmatpush.bf16.msra.mxu0 %v1254
    %1828 = vmatpush.bf16.msra.mxu0 %v1250
    %1829 = vmatpush.bf16.msra.mxu0 %v1246
    %1830 = vmatpush.bf16.msra.mxu0 %v1242
    %1831 = vmatpush.bf16.msra.mxu0 %v1238
    %1832 = vmatpush.bf16.msra.mxu0 %v1234
    %1833 = vmatpush.bf16.msra.mxu0 %v1230
    %1834 = vmatmul.bf16.gmra.mxu0 %v414
    %v1835 = vpop.f32.mrf.mxu0
    %v1836 = vadd.f32 %v1823, %v1835
    %v1837 = vpop.f32.mrf.mxu0
    %1838 = vdwg.mxu0
    %1839 = vmatpush.bf16.msra.mxu0 %v1290
    %1840 = vmatpush.bf16.msra.mxu0 %v1286
    %1841 = vmatpush.bf16.msra.mxu0 %v1282
    %1842 = vmatpush.bf16.msra.mxu0 %v1278
    %1843 = vmatpush.bf16.msra.mxu0 %v1274
    %1844 = vmatpush.bf16.msra.mxu0 %v1270
    %1845 = vmatpush.bf16.msra.mxu0 %v1266
    %1846 = vmatpush.bf16.msra.mxu0 %v1262
    %1847 = vmatmul.bf16.gmra.mxu0 %v415
    %v1848 = vpop.f32.mrf.mxu0
    %v1849 = vadd.f32 %v1836, %v1848
    %v1850 = vpop.f32.mrf.mxu0
    %1851 = vdwg.mxu0
    %1852 = vmatpush.bf16.msra.mxu0 %v1322
    %1853 = vmatpush.bf16.msra.mxu0 %v1318
    %1854 = vmatpush.bf16.msra.mxu0 %v1314
    %1855 = vmatpush.bf16.msra.mxu0 %v1310
    %1856 = vmatpush.bf16.msra.mxu0 %v1306
    %1857 = vmatpush.bf16.msra.mxu0 %v1302
    %1858 = vmatpush.bf16.msra.mxu0 %v1298
    %1859 = vmatpush.bf16.msra.mxu0 %v1294
    %1860 = vmatmul.bf16.gmra.mxu0 %v416
    %v1861 = vpop.f32.mrf.mxu0
    %v1862 = vadd.f32 %v1849, %v1861
    %v1863 = vpop.f32.mrf.mxu0
    %1864 = vdwg.mxu0
    %1865 = vmatpush.bf16.msra.mxu0 %v1354
    %1866 = vmatpush.bf16.msra.mxu0 %v1350
    %1867 = vmatpush.bf16.msra.mxu0 %v1346
    %1868 = vmatpush.bf16.msra.mxu0 %v1342
    %1869 = vmatpush.bf16.msra.mxu0 %v1338
    %1870 = vmatpush.bf16.msra.mxu0 %v1334
    %1871 = vmatpush.bf16.msra.mxu0 %v1330
    %1872 = vmatpush.bf16.msra.mxu0 %v1326
    %1873 = vmatmul.bf16.gmra.mxu0 %v417
    %v1874 = vpop.f32.mrf.mxu0
    %v1875 = vadd.f32 %v1862, %v1874
    %v1876 = vpop.f32.mrf.mxu0
    %1877 = vdwg.mxu0
    %1878 = vmatpush.bf16.msra.mxu0 %v1386
    %1879 = vmatpush.bf16.msra.mxu0 %v1382
    %1880 = vmatpush.bf16.msra.mxu0 %v1378
    %1881 = vmatpush.bf16.msra.mxu0 %v1374
    %1882 = vmatpush.bf16.msra.mxu0 %v1370
    %1883 = vmatpush.bf16.msra.mxu0 %v1366
    %1884 = vmatpush.bf16.msra.mxu0 %v1362
    %1885 = vmatpush.bf16.msra.mxu0 %v1358
    %1886 = vmatmul.bf16.gmra.mxu0 %v418
    %v1887 = vpop.f32.mrf.mxu0
    %v1888 = vadd.f32 %v1875, %v1887
    %v1889 = vpop.f32.mrf.mxu0
    %1890 = vdwg.mxu0
    %1891 = vmatpush.bf16.msra.mxu0 %v1418
    %1892 = vmatpush.bf16.msra.mxu0 %v1414
    %1893 = vmatpush.bf16.msra.mxu0 %v1410
    %1894 = vmatpush.bf16.msra.mxu0 %v1406
    %1895 = vmatpush.bf16.msra.mxu0 %v1402
    %1896 = vmatpush.bf16.msra.mxu0 %v1398
    %1897 = vmatpush.bf16.msra.mxu0 %v1394
    %1898 = vmatpush.bf16.msra.mxu0 %v1390
    %1899 = vmatmul.bf16.gmra.mxu0 %v419
    %v1900 = vpop.f32.mrf.mxu0
    %v1901 = vadd.f32 %v1888, %v1900
    %v1902 = vpop.f32.mrf.mxu0
    %1903 = vdwg.mxu0
    %1904 = vmatpush.bf16.msra.mxu0 %v1450
    %1905 = vmatpush.bf16.msra.mxu0 %v1446
    %1906 = vmatpush.bf16.msra.mxu0 %v1442
    %1907 = vmatpush.bf16.msra.mxu0 %v1438
    %1908 = vmatpush.bf16.msra.mxu0 %v1434
    %1909 = vmatpush.bf16.msra.mxu0 %v1430
    %1910 = vmatpush.bf16.msra.mxu0 %v1426
    %1911 = vmatpush.bf16.msra.mxu0 %v1422
    %1912 = vmatmul.bf16.gmra.mxu0 %v420
    %v1913 = vpop.f32.mrf.mxu0
    %v1914 = vadd.f32 %v1901, %v1913
    %v1915 = vpop.f32.mrf.mxu0
    %1916 = vdwg.mxu0
    %1917 = vmatpush.bf16.msra.mxu0 %v1227
    %1918 = vmatpush.bf16.msra.mxu0 %v1223
    %1919 = vmatpush.bf16.msra.mxu0 %v1219
    %1920 = vmatpush.bf16.msra.mxu0 %v1215
    %1921 = vmatpush.bf16.msra.mxu0 %v1211
    %1922 = vmatpush.bf16.msra.mxu0 %v1207
    %1923 = vmatpush.bf16.msra.mxu0 %v1203
    %1924 = vmatpush.bf16.msra.mxu0 %v1199
    %1925 = vmatmul.bf16.gmra.mxu0 %v413
    %v1926 = vpop.f32.mrf.mxu0
    %v1927 = vadd.f32 %v395, %v1926
    %v1928 = vpop.f32.mrf.mxu0
    %1929 = vdwg.mxu0
    %1930 = vmatpush.bf16.msra.mxu0 %v1259
    %1931 = vmatpush.bf16.msra.mxu0 %v1255
    %1932 = vmatpush.bf16.msra.mxu0 %v1251
    %1933 = vmatpush.bf16.msra.mxu0 %v1247
    %1934 = vmatpush.bf16.msra.mxu0 %v1243
    %1935 = vmatpush.bf16.msra.mxu0 %v1239
    %1936 = vmatpush.bf16.msra.mxu0 %v1235
    %1937 = vmatpush.bf16.msra.mxu0 %v1231
    %1938 = vmatmul.bf16.gmra.mxu0 %v414
    %v1939 = vpop.f32.mrf.mxu0
    %v1940 = vadd.f32 %v1927, %v1939
    %v1941 = vpop.f32.mrf.mxu0
    %1942 = vdwg.mxu0
    %1943 = vmatpush.bf16.msra.mxu0 %v1291
    %1944 = vmatpush.bf16.msra.mxu0 %v1287
    %1945 = vmatpush.bf16.msra.mxu0 %v1283
    %1946 = vmatpush.bf16.msra.mxu0 %v1279
    %1947 = vmatpush.bf16.msra.mxu0 %v1275
    %1948 = vmatpush.bf16.msra.mxu0 %v1271
    %1949 = vmatpush.bf16.msra.mxu0 %v1267
    %1950 = vmatpush.bf16.msra.mxu0 %v1263
    %1951 = vmatmul.bf16.gmra.mxu0 %v415
    %v1952 = vpop.f32.mrf.mxu0
    %v1953 = vadd.f32 %v1940, %v1952
    %v1954 = vpop.f32.mrf.mxu0
    %1955 = vdwg.mxu0
    %1956 = vmatpush.bf16.msra.mxu0 %v1323
    %1957 = vmatpush.bf16.msra.mxu0 %v1319
    %1958 = vmatpush.bf16.msra.mxu0 %v1315
    %1959 = vmatpush.bf16.msra.mxu0 %v1311
    %1960 = vmatpush.bf16.msra.mxu0 %v1307
    %1961 = vmatpush.bf16.msra.mxu0 %v1303
    %1962 = vmatpush.bf16.msra.mxu0 %v1299
    %1963 = vmatpush.bf16.msra.mxu0 %v1295
    %1964 = vmatmul.bf16.gmra.mxu0 %v416
    %v1965 = vpop.f32.mrf.mxu0
    %v1966 = vadd.f32 %v1953, %v1965
    %v1967 = vpop.f32.mrf.mxu0
    %1968 = vdwg.mxu0
    %1969 = vmatpush.bf16.msra.mxu0 %v1355
    %1970 = vmatpush.bf16.msra.mxu0 %v1351
    %1971 = vmatpush.bf16.msra.mxu0 %v1347
    %1972 = vmatpush.bf16.msra.mxu0 %v1343
    %1973 = vmatpush.bf16.msra.mxu0 %v1339
    %1974 = vmatpush.bf16.msra.mxu0 %v1335
    %1975 = vmatpush.bf16.msra.mxu0 %v1331
    %1976 = vmatpush.bf16.msra.mxu0 %v1327
    %1977 = vmatmul.bf16.gmra.mxu0 %v417
    %v1978 = vpop.f32.mrf.mxu0
    %v1979 = vadd.f32 %v1966, %v1978
    %v1980 = vpop.f32.mrf.mxu0
    %1981 = vdwg.mxu0
    %1982 = vmatpush.bf16.msra.mxu0 %v1387
    %1983 = vmatpush.bf16.msra.mxu0 %v1383
    %1984 = vmatpush.bf16.msra.mxu0 %v1379
    %1985 = vmatpush.bf16.msra.mxu0 %v1375
    %1986 = vmatpush.bf16.msra.mxu0 %v1371
    %1987 = vmatpush.bf16.msra.mxu0 %v1367
    %1988 = vmatpush.bf16.msra.mxu0 %v1363
    %1989 = vmatpush.bf16.msra.mxu0 %v1359
    %1990 = vmatmul.bf16.gmra.mxu0 %v418
    %v1991 = vpop.f32.mrf.mxu0
    %v1992 = vadd.f32 %v1979, %v1991
    %v1993 = vpop.f32.mrf.mxu0
    %1994 = vdwg.mxu0
    %1995 = vmatpush.bf16.msra.mxu0 %v1419
    %1996 = vmatpush.bf16.msra.mxu0 %v1415
    %1997 = vmatpush.bf16.msra.mxu0 %v1411
    %1998 = vmatpush.bf16.msra.mxu0 %v1407
    %1999 = vmatpush.bf16.msra.mxu0 %v1403
    %2000 = vmatpush.bf16.msra.mxu0 %v1399
    %2001 = vmatpush.bf16.msra.mxu0 %v1395
    %2002 = vmatpush.bf16.msra.mxu0 %v1391
    %2003 = vmatmul.bf16.gmra.mxu0 %v419
    %v2004 = vpop.f32.mrf.mxu0
    %v2005 = vadd.f32 %v1992, %v2004
    %v2006 = vpop.f32.mrf.mxu0
    %2007 = vdwg.mxu0
    %2008 = vmatpush.bf16.msra.mxu0 %v1451
    %2009 = vmatpush.bf16.msra.mxu0 %v1447
    %2010 = vmatpush.bf16.msra.mxu0 %v1443
    %2011 = vmatpush.bf16.msra.mxu0 %v1439
    %2012 = vmatpush.bf16.msra.mxu0 %v1435
    %2013 = vmatpush.bf16.msra.mxu0 %v1431
    %2014 = vmatpush.bf16.msra.mxu0 %v1427
    %2015 = vmatpush.bf16.msra.mxu0 %v1423
    %2016 = vmatmul.bf16.gmra.mxu0 %v420
    %v2017 = vpop.f32.mrf.mxu0
    %v2018 = vadd.f32 %v2005, %v2017
    %v2019 = vpop.f32.mrf.mxu0
    %2020 = vdwg.mxu0
    %2021 = vmatpush.bf16.msra.mxu0 %v1228
    %2022 = vmatpush.bf16.msra.mxu0 %v1224
    %2023 = vmatpush.bf16.msra.mxu0 %v1220
    %2024 = vmatpush.bf16.msra.mxu0 %v1216
    %2025 = vmatpush.bf16.msra.mxu0 %v1212
    %2026 = vmatpush.bf16.msra.mxu0 %v1208
    %2027 = vmatpush.bf16.msra.mxu0 %v1204
    %2028 = vmatpush.bf16.msra.mxu0 %v1200
    %2029 = vmatmul.bf16.gmra.mxu0 %v413
    %v2030 = vpop.f32.mrf.mxu0
    %v2031 = vadd.f32 %v396, %v2030
    %v2032 = vpop.f32.mrf.mxu0
    %2033 = vdwg.mxu0
    %2034 = vmatpush.bf16.msra.mxu0 %v1260
    %2035 = vmatpush.bf16.msra.mxu0 %v1256
    %2036 = vmatpush.bf16.msra.mxu0 %v1252
    %2037 = vmatpush.bf16.msra.mxu0 %v1248
    %2038 = vmatpush.bf16.msra.mxu0 %v1244
    %2039 = vmatpush.bf16.msra.mxu0 %v1240
    %2040 = vmatpush.bf16.msra.mxu0 %v1236
    %2041 = vmatpush.bf16.msra.mxu0 %v1232
    %2042 = vmatmul.bf16.gmra.mxu0 %v414
    %v2043 = vpop.f32.mrf.mxu0
    %v2044 = vadd.f32 %v2031, %v2043
    %v2045 = vpop.f32.mrf.mxu0
    %2046 = vdwg.mxu0
    %2047 = vmatpush.bf16.msra.mxu0 %v1292
    %2048 = vmatpush.bf16.msra.mxu0 %v1288
    %2049 = vmatpush.bf16.msra.mxu0 %v1284
    %2050 = vmatpush.bf16.msra.mxu0 %v1280
    %2051 = vmatpush.bf16.msra.mxu0 %v1276
    %2052 = vmatpush.bf16.msra.mxu0 %v1272
    %2053 = vmatpush.bf16.msra.mxu0 %v1268
    %2054 = vmatpush.bf16.msra.mxu0 %v1264
    %2055 = vmatmul.bf16.gmra.mxu0 %v415
    %v2056 = vpop.f32.mrf.mxu0
    %v2057 = vadd.f32 %v2044, %v2056
    %v2058 = vpop.f32.mrf.mxu0
    %2059 = vdwg.mxu0
    %2060 = vmatpush.bf16.msra.mxu0 %v1324
    %2061 = vmatpush.bf16.msra.mxu0 %v1320
    %2062 = vmatpush.bf16.msra.mxu0 %v1316
    %2063 = vmatpush.bf16.msra.mxu0 %v1312
    %2064 = vmatpush.bf16.msra.mxu0 %v1308
    %2065 = vmatpush.bf16.msra.mxu0 %v1304
    %2066 = vmatpush.bf16.msra.mxu0 %v1300
    %2067 = vmatpush.bf16.msra.mxu0 %v1296
    %2068 = vmatmul.bf16.gmra.mxu0 %v416
    %v2069 = vpop.f32.mrf.mxu0
    %v2070 = vadd.f32 %v2057, %v2069
    %v2071 = vpop.f32.mrf.mxu0
    %2072 = vdwg.mxu0
    %2073 = vmatpush.bf16.msra.mxu0 %v1356
    %2074 = vmatpush.bf16.msra.mxu0 %v1352
    %2075 = vmatpush.bf16.msra.mxu0 %v1348
    %2076 = vmatpush.bf16.msra.mxu0 %v1344
    %2077 = vmatpush.bf16.msra.mxu0 %v1340
    %2078 = vmatpush.bf16.msra.mxu0 %v1336
    %2079 = vmatpush.bf16.msra.mxu0 %v1332
    %2080 = vmatpush.bf16.msra.mxu0 %v1328
    %2081 = vmatmul.bf16.gmra.mxu0 %v417
    %v2082 = vpop.f32.mrf.mxu0
    %v2083 = vadd.f32 %v2070, %v2082
    %v2084 = vpop.f32.mrf.mxu0
    %2085 = vdwg.mxu0
    %2086 = vmatpush.bf16.msra.mxu0 %v1388
    %2087 = vmatpush.bf16.msra.mxu0 %v1384
    %2088 = vmatpush.bf16.msra.mxu0 %v1380
    %2089 = vmatpush.bf16.msra.mxu0 %v1376
    %2090 = vmatpush.bf16.msra.mxu0 %v1372
    %2091 = vmatpush.bf16.msra.mxu0 %v1368
    %2092 = vmatpush.bf16.msra.mxu0 %v1364
    %2093 = vmatpush.bf16.msra.mxu0 %v1360
    %2094 = vmatmul.bf16.gmra.mxu0 %v418
    %v2095 = vpop.f32.mrf.mxu0
    %v2096 = vadd.f32 %v2083, %v2095
    %v2097 = vpop.f32.mrf.mxu0
    %2098 = vdwg.mxu0
    %2099 = vmatpush.bf16.msra.mxu0 %v1420
    %2100 = vmatpush.bf16.msra.mxu0 %v1416
    %2101 = vmatpush.bf16.msra.mxu0 %v1412
    %2102 = vmatpush.bf16.msra.mxu0 %v1408
    %2103 = vmatpush.bf16.msra.mxu0 %v1404
    %2104 = vmatpush.bf16.msra.mxu0 %v1400
    %2105 = vmatpush.bf16.msra.mxu0 %v1396
    %2106 = vmatpush.bf16.msra.mxu0 %v1392
    %2107 = vmatmul.bf16.gmra.mxu0 %v419
    %v2108 = vpop.f32.mrf.mxu0
    %v2109 = vadd.f32 %v2096, %v2108
    %v2110 = vpop.f32.mrf.mxu0
    %2111 = vdwg.mxu0
    %2112 = vmatpush.bf16.msra.mxu0 %v1452
    %2113 = vmatpush.bf16.msra.mxu0 %v1448
    %2114 = vmatpush.bf16.msra.mxu0 %v1444
    %2115 = vmatpush.bf16.msra.mxu0 %v1440
    %2116 = vmatpush.bf16.msra.mxu0 %v1436
    %2117 = vmatpush.bf16.msra.mxu0 %v1432
    %2118 = vmatpush.bf16.msra.mxu0 %v1428
    %2119 = vmatpush.bf16.msra.mxu0 %v1424
    %2120 = vmatmul.bf16.gmra.mxu0 %v420
    %v2121 = vpop.f32.mrf.mxu0
    %v2122 = vadd.f32 %v2109, %v2121
    %v2123 = vpop.f32.mrf.mxu0
    %2124 = vdwg.mxu0
    %v2125 = vmax.f32 %v1810, 0.0
    %v2126 = vmax.f32 %v1914, 0.0
    %v2127 = vmax.f32 %v2018, 0.0
    %v2128 = vmax.f32 %v2122, 0.0
    %v2129 = vpack.c.bf16 %v2125, %v2125
    %v2130 = vpack.c.bf16 %v2126, %v2126
    %v2131 = vpack.c.bf16 %v2127, %v2127
    %v2132 = vpack.c.bf16 %v2128, %v2128
    %v2133 = vld [vmem:[#allocation9] sm:$0xf]
    %v2134 = vld [vmem:[#allocation9 + $0x4] sm:$0xf]
    %v2135 = vld [vmem:[#allocation9 + $0x8] sm:$0xf]
    %v2136 = vld [vmem:[#allocation9 + $0xc] sm:$0xf]
    %v2137 = vld [vmem:[#allocation9 + $0x10] sm:$0xf]
    %v2138 = vld [vmem:[#allocation9 + $0x14] sm:$0xf]
    %v2139 = vld [vmem:[#allocation9 + $0x18] sm:$0xf]
    %v2140 = vld [vmem:[#allocation9 + $0x1c] sm:$0xf]
    %v2141 = vld [vmem:[#allocation9 + $0x20] sm:$0xf]
    %v2142 = vld [vmem:[#allocation9 + $0x24] sm:$0xf]
    %v2143 = vld [vmem:[#allocation9 + $0x28] sm:$0xf]
    %v2144 = vld [vmem:[#allocation9 + $0x2c] sm:$0xf]
    %v2145 = vld [vmem:[#allocation9 + $0x30] sm:$0xf]
    %v2146 = vld [vmem:[#allocation9 + $0x34] sm:$0xf]
    %v2147 = vld [vmem:[#allocation9 + $0x38] sm:$0xf]
    %v2148 = vld [vmem:[#allocation9 + $0x3c] sm:$0xf]
    %v2149 = vld [vmem:[#allocation9 + $0x40] sm:$0xf]
    %v2150 = vld [vmem:[#allocation9 + $0x44] sm:$0xf]
    %v2151 = vld [vmem:[#allocation9 + $0x48] sm:$0xf]
    %v2152 = vld [vmem:[#allocation9 + $0x4c] sm:$0xf]
    %v2153 = vld [vmem:[#allocation9 + $0x50] sm:$0xf]
    %v2154 = vld [vmem:[#allocation9 + $0x54] sm:$0xf]
    %v2155 = vld [vmem:[#allocation9 + $0x58] sm:$0xf]
    %v2156 = vld [vmem:[#allocation9 + $0x5c] sm:$0xf]
    %v2157 = vld [vmem:[#allocation9 + $0x60] sm:$0xf]
    %v2158 = vld [vmem:[#allocation9 + $0x64] sm:$0xf]
    %v2159 = vld [vmem:[#allocation9 + $0x68] sm:$0xf]
    %v2160 = vld [vmem:[#allocation9 + $0x6c] sm:$0xf]
    %v2161 = vld [vmem:[#allocation9 + $0x70] sm:$0xf]
    %v2162 = vld [vmem:[#allocation9 + $0x74] sm:$0xf]
    %v2163 = vld [vmem:[#allocation9 + $0x78] sm:$0xf]
    %v2164 = vld [vmem:[#allocation9 + $0x7c] sm:$0xf]
    %v2165 = vld [vmem:[#allocation9 + $0x80] sm:$0xf]
    %v2166 = vld [vmem:[#allocation9 + $0x84] sm:$0xf]
    %v2167 = vld [vmem:[#allocation9 + $0x88] sm:$0xf]
    %v2168 = vld [vmem:[#allocation9 + $0x8c] sm:$0xf]
    %v2169 = vld [vmem:[#allocation9 + $0x90] sm:$0xf]
    %v2170 = vld [vmem:[#allocation9 + $0x94] sm:$0xf]
    %v2171 = vld [vmem:[#allocation9 + $0x98] sm:$0xf]
    %v2172 = vld [vmem:[#allocation9 + $0x9c] sm:$0xf]
    %v2173 = vld [vmem:[#allocation9 + $0xa0] sm:$0xf]
    %v2174 = vld [vmem:[#allocation9 + $0xa4] sm:$0xf]
    %v2175 = vld [vmem:[#allocation9 + $0xa8] sm:$0xf]
    %v2176 = vld [vmem:[#allocation9 + $0xac] sm:$0xf]
    %v2177 = vld [vmem:[#allocation9 + $0xb0] sm:$0xf]
    %v2178 = vld [vmem:[#allocation9 + $0xb4] sm:$0xf]
    %v2179 = vld [vmem:[#allocation9 + $0xb8] sm:$0xf]
    %v2180 = vld [vmem:[#allocation9 + $0xbc] sm:$0xf]
    %v2181 = vld [vmem:[#allocation9 + $0xc0] sm:$0xf]
    %v2182 = vld [vmem:[#allocation9 + $0xc4] sm:$0xf]
    %v2183 = vld [vmem:[#allocation9 + $0xc8] sm:$0xf]
    %v2184 = vld [vmem:[#allocation9 + $0xcc] sm:$0xf]
    %v2185 = vld [vmem:[#allocation9 + $0xd0] sm:$0xf]
    %v2186 = vld [vmem:[#allocation9 + $0xd4] sm:$0xf]
    %v2187 = vld [vmem:[#allocation9 + $0xd8] sm:$0xf]
    %v2188 = vld [vmem:[#allocation9 + $0xdc] sm:$0xf]
    %v2189 = vld [vmem:[#allocation9 + $0xe0] sm:$0xf]
    %v2190 = vld [vmem:[#allocation9 + $0xe4] sm:$0xf]
    %v2191 = vld [vmem:[#allocation9 + $0xe8] sm:$0xf]
    %v2192 = vld [vmem:[#allocation9 + $0xec] sm:$0xf]
    %v2193 = vld [vmem:[#allocation9 + $0xf0] sm:$0xf]
    %v2194 = vld [vmem:[#allocation9 + $0xf4] sm:$0xf]
    %v2195 = vld [vmem:[#allocation9 + $0xf8] sm:$0xf]
    %v2196 = vld [vmem:[#allocation9 + $0xfc] sm:$0xf]
    %v2197 = vld [vmem:[%s4] sm:$0x1]
    %v2199 = vperm.slane %v2197, 0
    %v2265 = vunpack.c.l.b16 %v2133
    %v2266 = vunpack.c.l.b16 %v2134
    %v2267 = vunpack.c.l.b16 %v2135
    %v2268 = vunpack.c.l.b16 %v2136
    %v2269 = vunpack.c.l.b16 %v2137
    %v2270 = vunpack.c.l.b16 %v2138
    %v2271 = vunpack.c.l.b16 %v2139
    %v2272 = vunpack.c.l.b16 %v2140
    %v2273 = vunpack.c.l.b16 %v2141
    %v2274 = vunpack.c.l.b16 %v2142
    %v2275 = vunpack.c.l.b16 %v2143
    %v2276 = vunpack.c.l.b16 %v2144
    %v2277 = vunpack.c.l.b16 %v2145
    %v2278 = vunpack.c.l.b16 %v2146
    %v2279 = vunpack.c.l.b16 %v2147
    %v2280 = vunpack.c.l.b16 %v2148
    %v2281 = vunpack.c.l.b16 %v2149
    %v2282 = vunpack.c.l.b16 %v2150
    %v2283 = vunpack.c.l.b16 %v2151
    %v2284 = vunpack.c.l.b16 %v2152
    %v2285 = vunpack.c.l.b16 %v2153
    %v2286 = vunpack.c.l.b16 %v2154
    %v2287 = vunpack.c.l.b16 %v2155
    %v2288 = vunpack.c.l.b16 %v2156
    %v2289 = vunpack.c.l.b16 %v2157
    %v2290 = vunpack.c.l.b16 %v2158
    %v2291 = vunpack.c.l.b16 %v2159
    %v2292 = vunpack.c.l.b16 %v2160
    %v2293 = vunpack.c.l.b16 %v2161
    %v2294 = vunpack.c.l.b16 %v2162
    %v2295 = vunpack.c.l.b16 %v2163
    %v2296 = vunpack.c.l.b16 %v2164
    %v2297 = vunpack.c.l.b16 %v2165
    %v2298 = vunpack.c.l.b16 %v2166
    %v2299 = vunpack.c.l.b16 %v2167
    %v2300 = vunpack.c.l.b16 %v2168
    %v2301 = vunpack.c.l.b16 %v2169
    %v2302 = vunpack.c.l.b16 %v2170
    %v2303 = vunpack.c.l.b16 %v2171
    %v2304 = vunpack.c.l.b16 %v2172
    %v2305 = vunpack.c.l.b16 %v2173
    %v2306 = vunpack.c.l.b16 %v2174
    %v2307 = vunpack.c.l.b16 %v2175
    %v2308 = vunpack.c.l.b16 %v2176
    %v2309 = vunpack.c.l.b16 %v2177
    %v2310 = vunpack.c.l.b16 %v2178
    %v2311 = vunpack.c.l.b16 %v2179
    %v2312 = vunpack.c.l.b16 %v2180
    %v2313 = vunpack.c.l.b16 %v2181
    %v2314 = vunpack.c.l.b16 %v2182
    %v2315 = vunpack.c.l.b16 %v2183
    %v2316 = vunpack.c.l.b16 %v2184
    %v2317 = vunpack.c.l.b16 %v2185
    %v2318 = vunpack.c.l.b16 %v2186
    %v2319 = vunpack.c.l.b16 %v2187
    %v2320 = vunpack.c.l.b16 %v2188
    %v2321 = vunpack.c.l.b16 %v2189
    %v2322 = vunpack.c.l.b16 %v2190
    %v2323 = vunpack.c.l.b16 %v2191
    %v2324 = vunpack.c.l.b16 %v2192
    %v2325 = vunpack.c.l.b16 %v2193
    %v2326 = vunpack.c.l.b16 %v2194
    %v2327 = vunpack.c.l.b16 %v2195
    %v2328 = vunpack.c.l.b16 %v2196
    %v2329 = vpack.c.b16 %v2266, %v2265
    %v2330 = vpack.c.b16 %v2268, %v2267
    %v2331 = vpack.c.b16 %v2270, %v2269
    %v2332 = vpack.c.b16 %v2272, %v2271
    %v2333 = vpack.c.b16 %v2274, %v2273
    %v2334 = vpack.c.b16 %v2276, %v2275
    %v2335 = vpack.c.b16 %v2278, %v2277
    %v2336 = vpack.c.b16 %v2280, %v2279
    %v2337 = vpack.c.b16 %v2282, %v2281
    %v2338 = vpack.c.b16 %v2284, %v2283
    %v2339 = vpack.c.b16 %v2286, %v2285
    %v2340 = vpack.c.b16 %v2288, %v2287
    %v2341 = vpack.c.b16 %v2290, %v2289
    %v2342 = vpack.c.b16 %v2292, %v2291
    %v2343 = vpack.c.b16 %v2294, %v2293
    %v2344 = vpack.c.b16 %v2296, %v2295
    %v2345 = vpack.c.b16 %v2298, %v2297
    %v2346 = vpack.c.b16 %v2300, %v2299
    %v2347 = vpack.c.b16 %v2302, %v2301
    %v2348 = vpack.c.b16 %v2304, %v2303
    %v2349 = vpack.c.b16 %v2306, %v2305
    %v2350 = vpack.c.b16 %v2308, %v2307
    %v2351 = vpack.c.b16 %v2310, %v2309
    %v2352 = vpack.c.b16 %v2312, %v2311
    %v2353 = vpack.c.b16 %v2314, %v2313
    %v2354 = vpack.c.b16 %v2316, %v2315
    %v2355 = vpack.c.b16 %v2318, %v2317
    %v2356 = vpack.c.b16 %v2320, %v2319
    %v2357 = vpack.c.b16 %v2322, %v2321
    %v2358 = vpack.c.b16 %v2324, %v2323
    %v2359 = vpack.c.b16 %v2326, %v2325
    %v2360 = vpack.c.b16 %v2328, %v2327
    %2393 = vmatpush.bf16.msra.mxu0 %v2336
    %2394 = vmatpush.bf16.msra.mxu0 %v2335
    %2395 = vmatpush.bf16.msra.mxu0 %v2334
    %2396 = vmatpush.bf16.msra.mxu0 %v2333
    %2397 = vmatpush.bf16.msra.mxu0 %v2332
    %2398 = vmatpush.bf16.msra.mxu0 %v2331
    %2399 = vmatpush.bf16.msra.mxu0 %v2330
    %2400 = vmatpush.bf16.msra.mxu0 %v2329
    %2401 = vmatmul.bf16.gmra.mxu0 %v2129
    %v2402 = vpop.f32.mrf.mxu0
    %v2403 = vadd.f32 %v2199, %v2402
    %v2404 = vpop.f32.mrf.mxu0
    %2405 = vdwg.mxu0
    %2406 = vmatpush.bf16.msra.mxu0 %v2344
    %2407 = vmatpush.bf16.msra.mxu0 %v2343
    %2408 = vmatpush.bf16.msra.mxu0 %v2342
    %2409 = vmatpush.bf16.msra.mxu0 %v2341
    %2410 = vmatpush.bf16.msra.mxu0 %v2340
    %2411 = vmatpush.bf16.msra.mxu0 %v2339
    %2412 = vmatpush.bf16.msra.mxu0 %v2338
    %2413 = vmatpush.bf16.msra.mxu0 %v2337
    %2414 = vmatmul.bf16.gmra.mxu0 %v2130
    %v2415 = vpop.f32.mrf.mxu0
    %v2416 = vadd.f32 %v2403, %v2415
    %v2417 = vpop.f32.mrf.mxu0
    %2418 = vdwg.mxu0
    %2419 = vmatpush.bf16.msra.mxu0 %v2352
    %2420 = vmatpush.bf16.msra.mxu0 %v2351
    %2421 = vmatpush.bf16.msra.mxu0 %v2350
    %2422 = vmatpush.bf16.msra.mxu0 %v2349
    %2423 = vmatpush.bf16.msra.mxu0 %v2348
    %2424 = vmatpush.bf16.msra.mxu0 %v2347
    %2425 = vmatpush.bf16.msra.mxu0 %v2346
    %2426 = vmatpush.bf16.msra.mxu0 %v2345
    %2427 = vmatmul.bf16.gmra.mxu0 %v2131
    %v2428 = vpop.f32.mrf.mxu0
    %v2429 = vadd.f32 %v2416, %v2428
    %v2430 = vpop.f32.mrf.mxu0
    %2431 = vdwg.mxu0
    %2432 = vmatpush.bf16.msra.mxu0 %v2360
    %2433 = vmatpush.bf16.msra.mxu0 %v2359
    %2434 = vmatpush.bf16.msra.mxu0 %v2358
    %2435 = vmatpush.bf16.msra.mxu0 %v2357
    %2436 = vmatpush.bf16.msra.mxu0 %v2356
    %2437 = vmatpush.bf16.msra.mxu0 %v2355
    %2438 = vmatpush.bf16.msra.mxu0 %v2354
    %2439 = vmatpush.bf16.msra.mxu0 %v2353
    %2440 = vmatmul.bf16.gmra.mxu0 %v2132
    %v2441 = vpop.f32.mrf.mxu0
    %v2442 = vadd.f32 %v2429, %v2441
    %v2443 = vpop.f32.mrf.mxu0
    %2444 = vdwg.mxu0
    %v2445 = vmax.f32 %v2442, 0.0
    %v2446 = vpack.c.bf16 %v2445, %v2445
    %v2447 = vld [vmem:[#allocation11] sm:$0xf]
    %v2448 = vld [vmem:[#allocation11 + $0x4] sm:$0xf]
    %v2449 = vld [vmem:[#allocation11 + $0x8] sm:$0xf]
    %v2450 = vld [vmem:[#allocation11 + $0xc] sm:$0xf]
    %v2451 = vld [vmem:[#allocation11 + $0x10] sm:$0xf]
    %v2452 = vld [vmem:[#allocation11 + $0x14] sm:$0xf]
    %v2453 = vld [vmem:[#allocation11 + $0x18] sm:$0xf]
    %v2454 = vld [vmem:[#allocation11 + $0x1c] sm:$0xf]
    %v2455 = vld [vmem:[#allocation11 + $0x20] sm:$0xf]
    %v2456 = vld [vmem:[#allocation11 + $0x24] sm:$0xf]
    %v2457 = vld [vmem:[#allocation11 + $0x28] sm:$0xf]
    %v2458 = vld [vmem:[#allocation11 + $0x2c] sm:$0xf]
    %v2459 = vld [vmem:[#allocation11 + $0x30] sm:$0xf]
    %v2460 = vld [vmem:[#allocation11 + $0x34] sm:$0xf]
    %v2461 = vld [vmem:[#allocation11 + $0x38] sm:$0xf]
    %v2462 = vld [vmem:[#allocation11 + $0x3c] sm:$0xf]
    %v2463 = vld [vmem:[%s6] sm:$0x1]
    %v2465 = vperm.slane %v2463, 0
    %v2483 = vunpack.c.l.b16 %v2447
    %v2484 = vunpack.c.l.b16 %v2448
    %v2485 = vunpack.c.l.b16 %v2449
    %v2486 = vunpack.c.l.b16 %v2450
    %v2487 = vunpack.c.l.b16 %v2451
    %v2488 = vunpack.c.l.b16 %v2452
    %v2489 = vunpack.c.l.b16 %v2453
    %v2490 = vunpack.c.l.b16 %v2454
    %v2491 = vunpack.c.l.b16 %v2455
    %v2492 = vunpack.c.l.b16 %v2456
    %v2493 = vunpack.c.l.b16 %v2457
    %v2494 = vunpack.c.l.b16 %v2458
    %v2495 = vunpack.c.l.b16 %v2459
    %v2496 = vunpack.c.l.b16 %v2460
    %v2497 = vunpack.c.l.b16 %v2461
    %v2498 = vunpack.c.l.b16 %v2462
    %v2499 = vpack.c.b16 %v2484, %v2483
    %v2500 = vpack.c.b16 %v2486, %v2485
    %v2501 = vpack.c.b16 %v2488, %v2487
    %v2502 = vpack.c.b16 %v2490, %v2489
    %v2503 = vpack.c.b16 %v2492, %v2491
    %v2504 = vpack.c.b16 %v2494, %v2493
    %v2505 = vpack.c.b16 %v2496, %v2495
    %v2506 = vpack.c.b16 %v2498, %v2497
    %2515 = vmatpush.bf16.msra.mxu0 %v2506
    %2516 = vmatpush.bf16.msra.mxu0 %v2505
    %2517 = vmatpush.bf16.msra.mxu0 %v2504
    %2518 = vmatpush.bf16.msra.mxu0 %v2503
    %2519 = vmatpush.bf16.msra.mxu0 %v2502
    %2520 = vmatpush.bf16.msra.mxu0 %v2501
    %2521 = vmatpush.bf16.msra.mxu0 %v2500
    %2522 = vmatpush.bf16.msra.mxu0 %v2499
    %2523 = vmatmul.bf16.gmra.mxu0 %v2446
    %v2524 = vpop.f32.mrf.mxu0
    %v2525 = vadd.f32 %v2465, %v2524
    %v2526 = vpop.f32.mrf.mxu0
    %2527 = vdwg.mxu0
    %v2528 = vmax.f32 %v2525, 0.0
    %v2529 = vld [vmem:[%s7] sm:$0x1]
    %v2531 = vperm.slane %v2529, 0
    %v2533 = vmul.f32 %v2528, %v2531
    %2534 = vadd.xlane.f32.xlu0 %v2533
    %v2535 = vpop.xlane.xlu0 %2534
    %v2536 = vld [vmem:[#allocation2] sm:$0x1]
    %v2538 = vperm.slane %v2536, 0
    %v2540 = vadd.f32 %v2535, %v2538
    %v2541 = vpack.c.bf16 %v2528, %v2528
    %v2542 = vld [vmem:[#allocation12] sm:$0xff]
    %v2543 = vld [vmem:[#allocation12 + $0x8] sm:$0xff]
    %v2544 = vld [vmem:[#allocation12 + $0x10] sm:$0xff]
    %v2545 = vld [vmem:[#allocation12 + $0x18] sm:$0xff]
    %v2546 = vld [vmem:[#allocation12 + $0x20] sm:$0xff]
    %v2547 = vld [vmem:[#allocation12 + $0x28] sm:$0xff]
    %v2548 = vld [vmem:[#allocation12 + $0x30] sm:$0xff]
    %v2549 = vld [vmem:[#allocation12 + $0x38] sm:$0xff]
    %v2550 = vld [vmem:[#allocation12 + $0x40] sm:$0xff]
    %v2551 = vld [vmem:[#allocation12 + $0x48] sm:$0xff]
    %v2552 = vld [vmem:[#allocation12 + $0x50] sm:$0xff]
    %v2553 = vld [vmem:[#allocation12 + $0x58] sm:$0xff]
    %v2554 = vld [vmem:[#allocation12 + $0x60] sm:$0xff]
    %v2555 = vld [vmem:[#allocation12 + $0x68] sm:$0xff]
    %v2556 = vld [vmem:[#allocation12 + $0x70] sm:$0xff]
    %v2557 = vld [vmem:[#allocation12 + $0x78] sm:$0xff]
    %v2558 = vld [vmem:[%s10] sm:$0x3]
    %v2560 = vperm.slane %v2558, 0
    %v2561 = vperm.slane %v2558, 1
    %v2580 = vunpack.c.l.b16 %v2542
    %v2581 = vunpack.c.h.b16 %v2542
    %v2582 = vunpack.c.l.b16 %v2543
    %v2583 = vunpack.c.h.b16 %v2543
    %v2584 = vunpack.c.l.b16 %v2544
    %v2585 = vunpack.c.h.b16 %v2544
    %v2586 = vunpack.c.l.b16 %v2545
    %v2587 = vunpack.c.h.b16 %v2545
    %v2588 = vunpack.c.l.b16 %v2546
    %v2589 = vunpack.c.h.b16 %v2546
    %v2590 = vunpack.c.l.b16 %v2547
    %v2591 = vunpack.c.h.b16 %v2547
    %v2592 = vunpack.c.l.b16 %v2548
    %v2593 = vunpack.c.h.b16 %v2548
    %v2594 = vunpack.c.l.b16 %v2549
    %v2595 = vunpack.c.h.b16 %v2549
    %v2596 = vunpack.c.l.b16 %v2550
    %v2597 = vunpack.c.h.b16 %v2550
    %v2598 = vunpack.c.l.b16 %v2551
    %v2599 = vunpack.c.h.b16 %v2551
    %v2600 = vunpack.c.l.b16 %v2552
    %v2601 = vunpack.c.h.b16 %v2552
    %v2602 = vunpack.c.l.b16 %v2553
    %v2603 = vunpack.c.h.b16 %v2553
    %v2604 = vunpack.c.l.b16 %v2554
    %v2605 = vunpack.c.h.b16 %v2554
    %v2606 = vunpack.c.l.b16 %v2555
    %v2607 = vunpack.c.h.b16 %v2555
    %v2608 = vunpack.c.l.b16 %v2556
    %v2609 = vunpack.c.h.b16 %v2556
    %v2610 = vunpack.c.l.b16 %v2557
    %v2611 = vunpack.c.h.b16 %v2557
    %v2612 = vpack.c.b16 %v2582, %v2580
    %v2613 = vpack.c.b16 %v2583, %v2581
    %v2614 = vpack.c.b16 %v2586, %v2584
    %v2615 = vpack.c.b16 %v2587, %v2585
    %v2616 = vpack.c.b16 %v2590, %v2588
    %v2617 = vpack.c.b16 %v2591, %v2589
    %v2618 = vpack.c.b16 %v2594, %v2592
    %v2619 = vpack.c.b16 %v2595, %v2593
    %v2620 = vpack.c.b16 %v2598, %v2596
    %v2621 = vpack.c.b16 %v2599, %v2597
    %v2622 = vpack.c.b16 %v2602, %v2600
    %v2623 = vpack.c.b16 %v2603, %v2601
    %v2624 = vpack.c.b16 %v2606, %v2604
    %v2625 = vpack.c.b16 %v2607, %v2605
    %v2626 = vpack.c.b16 %v2610, %v2608
    %v2627 = vpack.c.b16 %v2611, %v2609
    %2644 = vmatpush.bf16.msra.mxu0 %v2626
    %2645 = vmatpush.bf16.msra.mxu0 %v2624
    %2646 = vmatpush.bf16.msra.mxu0 %v2622
    %2647 = vmatpush.bf16.msra.mxu0 %v2620
    %2648 = vmatpush.bf16.msra.mxu0 %v2618
    %2649 = vmatpush.bf16.msra.mxu0 %v2616
    %2650 = vmatpush.bf16.msra.mxu0 %v2614
    %2651 = vmatpush.bf16.msra.mxu0 %v2612
    %2652 = vmatmul.bf16.gmra.mxu0 %v2541
    %v2653 = vpop.f32.mrf.mxu0
    %v2654 = vadd.f32 %v2560, %v2653
    %v2655 = vpop.f32.mrf.mxu0
    %2656 = vdwg.mxu0
    %2657 = vmatpush.bf16.msra.mxu0 %v2627
    %2658 = vmatpush.bf16.msra.mxu0 %v2625
    %2659 = vmatpush.bf16.msra.mxu0 %v2623
    %2660 = vmatpush.bf16.msra.mxu0 %v2621
    %2661 = vmatpush.bf16.msra.mxu0 %v2619
    %2662 = vmatpush.bf16.msra.mxu0 %v2617
    %2663 = vmatpush.bf16.msra.mxu0 %v2615
    %2664 = vmatpush.bf16.msra.mxu0 %v2613
    %2665 = vmatmul.bf16.gmra.mxu0 %v2541
    %v2666 = vpop.f32.mrf.mxu0
    %v2667 = vadd.f32 %v2561, %v2666
    %v2668 = vpop.f32.mrf.mxu0
    %2669 = vdwg.mxu0
    %v2670 = vadd.f32 %v2654, %v2667
    %2671 = vadd.xlane.f32.xlu0 %v2670
    %v2672 = vpop.xlane.xlu0 %2671
    %v2673 = vmul.f32 %v2672, 0.004901961
    %2675 = vset.pattern.permute.xlu0 0
    %2676 = vperm.xlu0 %2675, %v2540
    %v2677 = vpop.permute.xlu0 %2676
    %v2679 = vadd.f32 %v2677, %v2654
    %v2680 = vadd.f32 %v2677, %v2667
    %v2681 = vsub.f32 %v2679, %v2673
    %v2682 = vsub.f32 %v2680, %v2673
    %2683 = vst [vmem:[#allocation14] sm:$0xff] %v2681
    %2684 = vst [vmem:[#allocation14 + $0x8] sm:$0xff] %v2682
    // Predicated region
    $region70: #{tpu_custom_call.1} parent=1 // pred_check
      _
    $region71: #{tpu_custom_call.1} parent=1 // pred_check_branch
      %2686 = sbr.rel (0) target = $region73
    $region72: #{tpu_custom_call.1} parent=1 // pred_region
      %2688 = vsyncadd [#allocation5], 0
      %s2690 = sshll.u32 [#allocation14], 4
      %s2691 = int_to_ptr.vmem [resolvable:$true] %s2690
      %s2692 = sshll.u32 %s11, 4
      %s2693 = int_to_ptr.hbm [resolvable:$true] %s2692
      %2695 = dma.vmem_to_hbm [thread:$0]  %s2691, 256, %s2693, [#allocation5]
    $region73: #{tpu_custom_call.1} parent=1 // pred_fallthru
      _
    // Predicated region
    $region74: #{tpu_custom_call.1} parent=1 // pred_check
      _
    $region75: #{tpu_custom_call.1} parent=1 // pred_check_branch
      %2697 = sbr.rel (0) target = $region77
    $region76: #{tpu_custom_call.1} parent=1 // pred_region
      %2699 = dma.done [#allocation5], 256
    $region77: #{tpu_custom_call.1} parent=1 // pred_fallthru
      _
    %2700 = vsyncpa [#allocation4], 1
    %2701 = vsyncpa [#allocation7], 1
    %2702 = vsyncpa [#allocation10], 1
    %2703 = vsyncpa [#allocation13], 1
    %2704 = vsyncpa [#allocation5], 1

</llo_original>
